<compile_context>
chip_gen: v7x
topology: tpu7x:2x2x1
jax: 0.10.0
libtpu: 0.0.40
codegen_flags: <defaults>
</compile_context>

<pallas_src>
import functools

import jax
import jax.numpy as jnp
from jax import lax
from jax.experimental import pallas as pl
from jax.experimental.pallas import tpu as pltpu


def encoder_layer_kernel(x_ref, mask_ref, wqkv_ref, bqkv_ref, wo_ref, vecs_ref,
                         w1_ref, b1_ref, w2_ref, out_ref, *, n_heads, hd):
    """One grid step == one encoder layer applied to one batch's resident residual stream."""
    l = pl.program_id(1)

    # Initialize the resident residual stream from the embedded input (first layer only).
    @pl.when(l == 0)
    def _():
        out_ref[...] = x_ref[...]

    H = n_heads * hd
    x = out_ref[0]                         # (S, H) f32 residual stream
    x_bf = x.astype(jnp.bfloat16)

    # Packed per-layer vector params: [bo, ln1_g, ln1_b, b2, ln2_g, ln2_b]
    vecs = vecs_ref[0]                     # (6, H) f32
    bo, g1, be1 = vecs[0:1], vecs[1:2], vecs[2:3]
    b2, g2, be2 = vecs[3:4], vecs[4:5], vecs[5:6]

    key_valid = mask_ref[0] != 0.0         # (1, S) bool; broadcasts over query rows

    # ---- fused QKV projection: one MXU pass with N = 3H -----------------------
    # (1/sqrt(hd) is folded into the Q columns/bias at parameter-packing time.)
    qkv = jnp.dot(x_bf, wqkv_ref[0], preferred_element_type=jnp.float32) + bqkv_ref[0]
    qkv_bf = qkv.astype(jnp.bfloat16)      # (S, 3H)

    # ---- per-head attention; context folded straight into the Wo matmul -------
    dn_qkt = (((1,), (1,)), ((), ()))      # q @ k^T without materializing a transpose
    attn = bo                              # (1, H) f32; broadcasts on first accumulate
    for h in range(n_heads):               # static unroll (small n_heads)
        q_h = qkv_bf[:, h * hd:(h + 1) * hd]
        k_h = qkv_bf[:, H + h * hd:H + (h + 1) * hd]
        v_h = qkv_bf[:, 2 * H + h * hd:2 * H + (h + 1) * hd]
        e = lax.dot_general(q_h, k_h, dn_qkt,
                            preferred_element_type=jnp.float32)        # (S, S) f32
        e = jnp.where(key_valid, e, -1e10)                             # exact masked_fill
        p = jnp.exp(e - jnp.max(e, axis=-1, keepdims=True))
        # approx reciprocal on the EUP slot; tiny deviation vs exact f32 divide
        a = p * pl.reciprocal(jnp.sum(p, axis=-1, keepdims=True), approx=True)
        ctx_h = jnp.dot(a.astype(jnp.bfloat16), v_h,
                        preferred_element_type=jnp.float32)            # (S, hd)
        attn = attn + jnp.dot(ctx_h.astype(jnp.bfloat16), wo_ref[0, h],
                              preferred_element_type=jnp.float32)      # (S, H)

    # ---- residual + layernorm 1 (f32) ------------------------------------------
    y = x + attn
    mu = jnp.mean(y, axis=-1, keepdims=True)
    d = y - mu
    var = jnp.mean(d * d, axis=-1, keepdims=True)
    y = d * lax.rsqrt(var + 1e-5) * g1 + be1

    # ---- positionwise feed-forward ----------------------------------------------
    h1 = jnp.dot(y.astype(jnp.bfloat16), w1_ref[0],
                 preferred_element_type=jnp.float32) + b1_ref[0]
    h1 = jnp.maximum(h1, 0.0)
    ff = jnp.dot(h1.astype(jnp.bfloat16), w2_ref[0],
                 preferred_element_type=jnp.float32) + b2

    # ---- residual + layernorm 2 ---------------------------------------------------
    z = y + ff
    mu2 = jnp.mean(z, axis=-1, keepdims=True)
    d2 = z - mu2
    var2 = jnp.mean(d2 * d2, axis=-1, keepdims=True)
    out_ref[0] = d2 * lax.rsqrt(var2 + 1e-5) * g2 + be2


def encoder_forward(src_tokens, src_mask, params, n_heads):
    """src_tokens: (B, S) int32; src_mask: (B, S) bool/int (1 = real token)."""
    B, S = src_tokens.shape
    H = params["tok_emb"].shape[1]
    L = params["wqkv"].shape[0]
    PF = params["w1"].shape[-1]
    assert S <= params["pos_emb"].shape[0], "sequence longer than max_length"
    assert H % n_heads == 0
    hd = H // n_heads

    # Glue: embedding lookups + scale + positional embedding (dropout = identity).
    pos = jnp.arange(S, dtype=jnp.int32)
    x = (params["tok_emb"][src_tokens] * jnp.sqrt(jnp.float32(H))
         + params["pos_emb"][pos][None, :, :]).astype(jnp.float32)     # (B, S, H)

    # Per-batch key-padding mask, float (1.0 = valid key, 0.0 = pad).
    mask = src_mask.astype(jnp.float32).reshape(B, 1, S)

    # VMEM budget: double-buffered per-layer weight blocks + resident activation blocks,
    # with generous headroom; clamp to v7x's 64 MiB physical VMEM.
    per_layer_w = sum(int(params[k].nbytes) // L
                      for k in ("wqkv", "bqkv", "wo", "vecs", "w1", "b1", "w2"))
    resident_act = 4 * (2 * S * H + S)      # x block + out block (f32) + mask block
    vmem_limit = int(min(64 << 20, max(8 << 20, 3 * (2 * per_layer_w + 2 * resident_act))))

    kernel = functools.partial(encoder_layer_kernel, n_heads=n_heads, hd=hd)
    out = pl.pallas_call(
        kernel,
        out_shape=jax.ShapeDtypeStruct((B, S, H), jnp.float32),
        grid=(B, L),
        in_specs=[
            pl.BlockSpec((1, S, H), lambda b, l: (b, 0, 0)),            # embedded input
            pl.BlockSpec((1, 1, S), lambda b, l: (b, 0, 0)),            # key-padding mask
            pl.BlockSpec((1, H, 3 * H), lambda b, l: (l, 0, 0)),        # fused Wqkv (bf16)
            pl.BlockSpec((1, 1, 3 * H), lambda b, l: (l, 0, 0)),        # fused qkv bias
            pl.BlockSpec((1, n_heads, hd, H), lambda b, l: (l, 0, 0, 0)),  # Wo, head-split
            pl.BlockSpec((1, 6, H), lambda b, l: (l, 0, 0)),            # packed bias/LN params
            pl.BlockSpec((1, H, PF), lambda b, l: (l, 0, 0)),           # fc1 weight (bf16)
            pl.BlockSpec((1, 1, PF), lambda b, l: (l, 0, 0)),           # fc1 bias
            pl.BlockSpec((1, PF, H), lambda b, l: (l, 0, 0)),           # fc2 weight (bf16)
        ],
        out_specs=pl.BlockSpec((1, S, H), lambda b, l: (b, 0, 0)),      # residual stream
        input_output_aliases={0: 0},        # output reuses the embedded-input HBM buffer
        compiler_params=pltpu.CompilerParams(
            dimension_semantics=("parallel", "arbitrary"),
            vmem_limit_bytes=vmem_limit),
    )(x, mask, params["wqkv"], params["bqkv"], params["wo"], params["vecs"],
      params["w1"], params["b1"], params["w2"])
    return out


def init_params(key, input_dim, hid_dim, n_layers, n_heads, pf_dim, max_length):
    hd = hid_dim // n_heads
    inv_scale = 1.0 / jnp.sqrt(jnp.float32(hd))
    ks = jax.random.split(key, 2 + n_layers)
    tok_emb = 0.02 * jax.random.normal(ks[0], (input_dim, hid_dim), jnp.float32)
    pos_emb = 0.02 * jax.random.normal(ks[1], (max_length, hid_dim), jnp.float32)

    wqkv, bqkv, wo, vecs, w1, b1, w2 = ([] for _ in range(7))
    for l in range(n_layers):
        lk = jax.random.split(ks[2 + l], 6)
        # Linear weights stored as (in, out): x @ W + b  (== PyTorch x @ W.T + b).
        # 1/sqrt(head_dim) is folded into the Q projection (and its bias) here.
        wq = 0.02 * jax.random.normal(lk[0], (hid_dim, hid_dim), jnp.float32) * inv_scale
        wk = 0.02 * jax.random.normal(lk[1], (hid_dim, hid_dim), jnp.float32)
        wv = 0.02 * jax.random.normal(lk[2], (hid_dim, hid_dim), jnp.float32)
        wo_l = 0.02 * jax.random.normal(lk[3], (hid_dim, hid_dim), jnp.float32)
        wqkv.append(jnp.concatenate([wq, wk, wv], axis=1))              # (H, 3H)
        bqkv.append(jnp.zeros((1, 3 * hid_dim), jnp.float32))           # [bq*scale, bk, bv]
        wo.append(wo_l.reshape(n_heads, hd, hid_dim))                   # head-split rows
        # Packed vector params: [bo, ln1_g, ln1_b, b2, ln2_g, ln2_b]
        z = jnp.zeros((hid_dim,), jnp.float32)
        o = jnp.ones((hid_dim,), jnp.float32)
        vecs.append(jnp.stack([z, o, z, z, o, z], axis=0))
        w1.append(0.02 * jax.random.normal(lk[4], (hid_dim, pf_dim), jnp.float32))
        b1.append(jnp.zeros((1, pf_dim), jnp.float32))
        w2.append(0.02 * jax.random.normal(lk[5], (pf_dim, hid_dim), jnp.float32))

    return {
        "tok_emb": tok_emb,
        "pos_emb": pos_emb,
        "wqkv": jnp.stack(wqkv).astype(jnp.bfloat16),   # (L, H, 3H)
        "bqkv": jnp.stack(bqkv).astype(jnp.float32),    # (L, 1, 3H)
        "wo": jnp.stack(wo).astype(jnp.bfloat16),       # (L, n_heads, hd, H)
        "vecs": jnp.stack(vecs).astype(jnp.float32),    # (L, 6, H)
        "w1": jnp.stack(w1).astype(jnp.bfloat16),       # (L, H, PF)
        "b1": jnp.stack(b1).astype(jnp.float32),        # (L, 1, PF)
        "w2": jnp.stack(w2).astype(jnp.bfloat16),       # (L, PF, H)
    }


if __name__ == "__main__":
    # Small config consistent with Encoder(input_dim, hid_dim, n_layers, n_heads,
    # pf_dim, dropout, device, max_length).
    # TODO(synk): for real deployments use H / PF that are multiples of 128 (256 on
    #             v6e/v7x) so matmuls and output stores are lane-dense.
    INPUT_DIM = 50     # vocab
    HID_DIM = 32
    N_LAYERS = 2
    N_HEADS = 4
    PF_DIM = 64
    MAX_LEN = 100
    B, S = 2, 8
    PAD_IDX = 0

    key = jax.random.PRNGKey(0)
    pkey, dkey = jax.random.split(key)
    params = init_params(pkey, INPUT_DIM, HID_DIM, N_LAYERS, N_HEADS, PF_DIM, MAX_LEN)

    src = jax.random.randint(dkey, (B, S), 1, INPUT_DIM, dtype=jnp.int32)
    # pad the tail of the second sequence to exercise the key-padding mask
    src = src.at[1, 6:].set(PAD_IDX)
    src_mask = (src != PAD_IDX)   # (B, S), True where real token

    out = encoder_forward(src, src_mask, params, N_HEADS)
    out = jax.block_until_ready(out)
    assert out.shape == (B, S, HID_DIM)
    assert bool(jnp.all(jnp.isfinite(out)))
    print("KERNEL_OK")
</pallas_src>

<mosaic_0001>
module attributes {stable_mosaic.version = 11 : i64} {
  func.func @encoder_layer_kernel(%arg0: i32, %arg1: i32, %arg2: memref<1x8x32xf32, #tpu.memory_space<vmem>>, %arg3: memref<1x1x8xf32, #tpu.memory_space<vmem>>, %arg4: memref<1x32x96xbf16, #tpu.memory_space<vmem>>, %arg5: memref<1x1x96xf32, #tpu.memory_space<vmem>>, %arg6: memref<1x4x8x32xbf16, #tpu.memory_space<vmem>>, %arg7: memref<1x6x32xf32, #tpu.memory_space<vmem>>, %arg8: memref<1x32x64xbf16, #tpu.memory_space<vmem>>, %arg9: memref<1x1x64xf32, #tpu.memory_space<vmem>>, %arg10: memref<1x64x32xbf16, #tpu.memory_space<vmem>>, %arg11: memref<1x8x32xf32, #tpu.memory_space<vmem>>) attributes {dimension_semantics = [#tpu.dimension_semantics<parallel>, #tpu.dimension_semantics<arbitrary>], iteration_bounds = array<i64: 2, 2>, scalar_prefetch = 0 : i64, scratch_operands = 0 : i64, tpu.core_type = #tpu.core_type<tc>, window_params = [{transform_indices = @transform_0, window_bounds = array<i64: 1, 8, 32>}, {transform_indices = @transform_1, window_bounds = array<i64: 1, 1, 8>}, {transform_indices = @transform_2, window_bounds = array<i64: 1, 32, 96>}, {transform_indices = @transform_3, window_bounds = array<i64: 1, 1, 96>}, {transform_indices = @transform_4, window_bounds = array<i64: 1, 4, 8, 32>}, {transform_indices = @transform_5, window_bounds = array<i64: 1, 6, 32>}, {transform_indices = @transform_6, window_bounds = array<i64: 1, 32, 64>}, {transform_indices = @transform_7, window_bounds = array<i64: 1, 1, 64>}, {transform_indices = @transform_8, window_bounds = array<i64: 1, 64, 32>}, {transform_indices = @transform_9, window_bounds = array<i64: 1, 8, 32>}]} {
    %c0_i32 = arith.constant 0 : i32
    %0 = arith.cmpi eq, %arg1, %c0_i32 : i32
    %1 = arith.extui %0 : i1 to i32
    %c0_i32_0 = arith.constant 0 : i32
    %2 = arith.cmpi ne, %1, %c0_i32_0 : i32
    scf.if %2 {
      %c0_78 = arith.constant 0 : index
      %c0_79 = arith.constant 0 : index
      %c0_80 = arith.constant 0 : index
      %188 = vector.load %arg2[%c0_78, %c0_79, %c0_80] : memref<1x8x32xf32, #tpu.memory_space<vmem>>, vector<1x8x32xf32>
      %c0_81 = arith.constant 0 : index
      %c0_82 = arith.constant 0 : index
      %c0_83 = arith.constant 0 : index
      %189 = vector.load %arg11[%c0_81, %c0_82, %c0_83] : memref<1x8x32xf32, #tpu.memory_space<vmem>>, vector<1x8x32xf32>
      tpu.vector_store %arg11[%c0_81, %c0_82, %c0_83], %188 {strides = array<i32>} : memref<1x8x32xf32, #tpu.memory_space<vmem>>, vector<1x8x32xf32>,
    } else {
    }
    %c0 = arith.constant 0 : index
    %c0_1 = arith.constant 0 : index
    %c0_2 = arith.constant 0 : index
    %3 = vector.load %arg11[%c0, %c0_1, %c0_2] : memref<1x8x32xf32, #tpu.memory_space<vmem>>, vector<1x8x32xf32>
    %4 = vector.shape_cast %3 : vector<1x8x32xf32> to vector<8x32xf32>
    %5 = arith.truncf %4 : vector<8x32xf32> to vector<8x32xbf16>
    %c0_3 = arith.constant 0 : index
    %c0_4 = arith.constant 0 : index
    %c0_5 = arith.constant 0 : index
    %6 = vector.load %arg7[%c0_3, %c0_4, %c0_5] : memref<1x6x32xf32, #tpu.memory_space<vmem>>, vector<1x6x32xf32>
    %7 = vector.shape_cast %6 : vector<1x6x32xf32> to vector<6x32xf32>
    %8 = vector.extract_strided_slice %7 {offsets = [0, 0], sizes = [1, 32], strides = [1, 1]} : vector<6x32xf32> to vector<1x32xf32>
    %9 = vector.extract_strided_slice %7 {offsets = [1, 0], sizes = [1, 32], strides = [1, 1]} : vector<6x32xf32> to vector<1x32xf32>
    %10 = vector.extract_strided_slice %7 {offsets = [2, 0], sizes = [1, 32], strides = [1, 1]} : vector<6x32xf32> to vector<1x32xf32>
    %11 = vector.extract_strided_slice %7 {offsets = [3, 0], sizes = [1, 32], strides = [1, 1]} : vector<6x32xf32> to vector<1x32xf32>
    %12 = vector.extract_strided_slice %7 {offsets = [4, 0], sizes = [1, 32], strides = [1, 1]} : vector<6x32xf32> to vector<1x32xf32>
    %13 = vector.extract_strided_slice %7 {offsets = [5, 0], sizes = [1, 32], strides = [1, 1]} : vector<6x32xf32> to vector<1x32xf32>
    %c0_6 = arith.constant 0 : index
    %c0_7 = arith.constant 0 : index
    %c0_8 = arith.constant 0 : index
    %14 = vector.load %arg3[%c0_6, %c0_7, %c0_8] : memref<1x1x8xf32, #tpu.memory_space<vmem>>, vector<1x1x8xf32>
    %15 = vector.shape_cast %14 : vector<1x1x8xf32> to vector<1x8xf32>
    %cst = arith.constant 0.000000e+00 : f32
    %16 = vector.broadcast %cst : f32 to vector<1x8xf32>
    %17 = arith.cmpf one, %15, %16 : vector<1x8xf32>
    %c0_9 = arith.constant 0 : index
    %c0_10 = arith.constant 0 : index
    %c0_11 = arith.constant 0 : index
    %18 = vector.load %arg4[%c0_9, %c0_10, %c0_11] : memref<1x32x96xbf16, #tpu.memory_space<vmem>>, vector<1x32x96xbf16>
    %19 = vector.shape_cast %18 : vector<1x32x96xbf16> to vector<32x96xbf16>
    %cst_12 = arith.constant dense<0.000000e+00> : vector<8x96xf32>
    %20 = tpu.matmul %5, %19, %cst_12 {dimension_numbers = #tpu.dot_dimension_numbers<[1], [0], [0], [1], [0, 0, 1, 1], [], []>} : vector<8x32xbf16>, vector<32x96xbf16>, vector<8x96xf32> -> vector<8x96xf32>
    %c0_13 = arith.constant 0 : index
    %c0_14 = arith.constant 0 : index
    %c0_15 = arith.constant 0 : index
    %21 = vector.load %arg5[%c0_13, %c0_14, %c0_15] : memref<1x1x96xf32, #tpu.memory_space<vmem>>, vector<1x1x96xf32>
    %22 = vector.shape_cast %21 : vector<1x1x96xf32> to vector<1x96xf32>
    %23 = vector.broadcast %22 : vector<1x96xf32> to vector<8x96xf32>
    %24 = arith.addf %20, %23 : vector<8x96xf32>
    %25 = arith.truncf %24 : vector<8x96xf32> to vector<8x96xbf16>
    %26 = vector.extract_strided_slice %25 {offsets = [0, 0], sizes = [8, 8], strides = [1, 1]} : vector<8x96xbf16> to vector<8x8xbf16>
    %27 = vector.extract_strided_slice %25 {offsets = [0, 32], sizes = [8, 8], strides = [1, 1]} : vector<8x96xbf16> to vector<8x8xbf16>
    %28 = vector.extract_strided_slice %25 {offsets = [0, 64], sizes = [8, 8], strides = [1, 1]} : vector<8x96xbf16> to vector<8x8xbf16>
    %cst_16 = arith.constant dense<0.000000e+00> : vector<8x8xf32>
    %29 = tpu.matmul %26, %27, %cst_16 {dimension_numbers = #tpu.dot_dimension_numbers<[1], [1], [0], [0], [0, 0, 1, 0], [], []>} : vector<8x8xbf16>, vector<8x8xbf16>, vector<8x8xf32> -> vector<8x8xf32>
    %cst_17 = arith.constant -1.000000e+10 : f32
    %30 = vector.shape_cast %17 : vector<1x8xi1> to vector<1x8xi1>
    %31 = vector.broadcast %30 : vector<1x8xi1> to vector<8x8xi1>
    %32 = vector.broadcast %cst_17 : f32 to vector<8x8xf32>
    %33 = arith.select %31, %29, %32 : vector<8x8xi1>, vector<8x8xf32>
    %cst_18 = arith.constant dense<0xFF800000> : vector<8xf32>
    %34 = vector.multi_reduction <maximumf>, %33, %cst_18 [1] : vector<8x8xf32> to vector<8xf32>
    %35 = vector.shape_cast %34 : vector<8xf32> to vector<8x1xf32>
    %36 = vector.broadcast %35 : vector<8x1xf32> to vector<8x8xf32>
    %37 = arith.subf %33, %36 : vector<8x8xf32>
    %38 = math.exp %37 : vector<8x8xf32>
    %cst_19 = arith.constant dense<0.000000e+00> : vector<8xf32>
    %39 = vector.multi_reduction <add>, %38, %cst_19 [1] : vector<8x8xf32> to vector<8xf32>
    %40 = vector.shape_cast %39 : vector<8xf32> to vector<8x1xf32>
    %41 = tpu.reciprocal %40 {approx = true} : vector<8x1xf32> -> vector<8x1xf32>
    %42 = vector.broadcast %41 : vector<8x1xf32> to vector<8x8xf32>
    %43 = arith.mulf %38, %42 : vector<8x8xf32>
    %44 = arith.truncf %43 : vector<8x8xf32> to vector<8x8xbf16>
    %cst_20 = arith.constant dense<0.000000e+00> : vector<8x8xf32>
    %45 = tpu.matmul %44, %28, %cst_20 {dimension_numbers = #tpu.dot_dimension_numbers<[1], [0], [0], [1], [0, 0, 1, 1], [], []>} : vector<8x8xbf16>, vector<8x8xbf16>, vector<8x8xf32> -> vector<8x8xf32>
    %46 = arith.truncf %45 : vector<8x8xf32> to vector<8x8xbf16>
    %c0_21 = arith.constant 0 : index
    %c0_22 = arith.constant 0 : index
    %c0_23 = arith.constant 0 : index
    %c0_24 = arith.constant 0 : index
    %47 = vector.load %arg6[%c0_21, %c0_22, %c0_23, %c0_24] : memref<1x4x8x32xbf16, #tpu.memory_space<vmem>>, vector<1x1x8x32xbf16>
    %48 = vector.shape_cast %47 : vector<1x1x8x32xbf16> to vector<8x32xbf16>
    %cst_25 = arith.constant dense<0.000000e+00> : vector<8x32xf32>
    %49 = tpu.matmul %46, %48, %cst_25 {dimension_numbers = #tpu.dot_dimension_numbers<[1], [0], [0], [1], [0, 0, 1, 1], [], []>} : vector<8x8xbf16>, vector<8x32xbf16>, vector<8x32xf32> -> vector<8x32xf32>
    %50 = vector.broadcast %8 : vector<1x32xf32> to vector<8x32xf32>
    %51 = arith.addf %50, %49 : vector<8x32xf32>
    %52 = vector.extract_strided_slice %25 {offsets = [0, 8], sizes = [8, 8], strides = [1, 1]} : vector<8x96xbf16> to vector<8x8xbf16>
    %53 = vector.extract_strided_slice %25 {offsets = [0, 40], sizes = [8, 8], strides = [1, 1]} : vector<8x96xbf16> to vector<8x8xbf16>
    %54 = vector.extract_strided_slice %25 {offsets = [0, 72], sizes = [8, 8], strides = [1, 1]} : vector<8x96xbf16> to vector<8x8xbf16>
    %cst_26 = arith.constant dense<0.000000e+00> : vector<8x8xf32>
    %55 = tpu.matmul %52, %53, %cst_26 {dimension_numbers = #tpu.dot_dimension_numbers<[1], [1], [0], [0], [0, 0, 1, 0], [], []>} : vector<8x8xbf16>, vector<8x8xbf16>, vector<8x8xf32> -> vector<8x8xf32>
    %cst_27 = arith.constant -1.000000e+10 : f32
    %56 = vector.shape_cast %17 : vector<1x8xi1> to vector<1x8xi1>
    %57 = vector.broadcast %56 : vector<1x8xi1> to vector<8x8xi1>
    %58 = vector.broadcast %cst_27 : f32 to vector<8x8xf32>
    %59 = arith.select %57, %55, %58 : vector<8x8xi1>, vector<8x8xf32>
    %cst_28 = arith.constant dense<0xFF800000> : vector<8xf32>
    %60 = vector.multi_reduction <maximumf>, %59, %cst_28 [1] : vector<8x8xf32> to vector<8xf32>
    %61 = vector.shape_cast %60 : vector<8xf32> to vector<8x1xf32>
    %62 = vector.broadcast %61 : vector<8x1xf32> to vector<8x8xf32>
    %63 = arith.subf %59, %62 : vector<8x8xf32>
    %64 = math.exp %63 : vector<8x8xf32>
    %cst_29 = arith.constant dense<0.000000e+00> : vector<8xf32>
    %65 = vector.multi_reduction <add>, %64, %cst_29 [1] : vector<8x8xf32> to vector<8xf32>
    %66 = vector.shape_cast %65 : vector<8xf32> to vector<8x1xf32>
    %67 = tpu.reciprocal %66 {approx = true} : vector<8x1xf32> -> vector<8x1xf32>
    %68 = vector.broadcast %67 : vector<8x1xf32> to vector<8x8xf32>
    %69 = arith.mulf %64, %68 : vector<8x8xf32>
    %70 = arith.truncf %69 : vector<8x8xf32> to vector<8x8xbf16>
    %cst_30 = arith.constant dense<0.000000e+00> : vector<8x8xf32>
    %71 = tpu.matmul %70, %54, %cst_30 {dimension_numbers = #tpu.dot_dimension_numbers<[1], [0], [0], [1], [0, 0, 1, 1], [], []>} : vector<8x8xbf16>, vector<8x8xbf16>, vector<8x8xf32> -> vector<8x8xf32>
    %72 = arith.truncf %71 : vector<8x8xf32> to vector<8x8xbf16>
    %c0_31 = arith.constant 0 : index
    %c1 = arith.constant 1 : index
    %c0_32 = arith.constant 0 : index
    %c0_33 = arith.constant 0 : index
    %73 = vector.load %arg6[%c0_31, %c1, %c0_32, %c0_33] : memref<1x4x8x32xbf16, #tpu.memory_space<vmem>>, vector<1x1x8x32xbf16>
    %74 = vector.shape_cast %73 : vector<1x1x8x32xbf16> to vector<8x32xbf16>
    %cst_34 = arith.constant dense<0.000000e+00> : vector<8x32xf32>
    %75 = tpu.matmul %72, %74, %cst_34 {dimension_numbers = #tpu.dot_dimension_numbers<[1], [0], [0], [1], [0, 0, 1, 1], [], []>} : vector<8x8xbf16>, vector<8x32xbf16>, vector<8x32xf32> -> vector<8x32xf32>
    %76 = arith.addf %51, %75 : vector<8x32xf32>
    %77 = vector.extract_strided_slice %25 {offsets = [0, 16], sizes = [8, 8], strides = [1, 1]} : vector<8x96xbf16> to vector<8x8xbf16>
    %78 = vector.extract_strided_slice %25 {offsets = [0, 48], sizes = [8, 8], strides = [1, 1]} : vector<8x96xbf16> to vector<8x8xbf16>
    %79 = vector.extract_strided_slice %25 {offsets = [0, 80], sizes = [8, 8], strides = [1, 1]} : vector<8x96xbf16> to vector<8x8xbf16>
    %cst_35 = arith.constant dense<0.000000e+00> : vector<8x8xf32>
    %80 = tpu.matmul %77, %78, %cst_35 {dimension_numbers = #tpu.dot_dimension_numbers<[1], [1], [0], [0], [0, 0, 1, 0], [], []>} : vector<8x8xbf16>, vector<8x8xbf16>, vector<8x8xf32> -> vector<8x8xf32>
    %cst_36 = arith.constant -1.000000e+10 : f32
    %81 = vector.shape_cast %17 : vector<1x8xi1> to vector<1x8xi1>
    %82 = vector.broadcast %81 : vector<1x8xi1> to vector<8x8xi1>
    %83 = vector.broadcast %cst_36 : f32 to vector<8x8xf32>
    %84 = arith.select %82, %80, %83 : vector<8x8xi1>, vector<8x8xf32>
    %cst_37 = arith.constant dense<0xFF800000> : vector<8xf32>
    %85 = vector.multi_reduction <maximumf>, %84, %cst_37 [1] : vector<8x8xf32> to vector<8xf32>
    %86 = vector.shape_cast %85 : vector<8xf32> to vector<8x1xf32>
    %87 = vector.broadcast %86 : vector<8x1xf32> to vector<8x8xf32>
    %88 = arith.subf %84, %87 : vector<8x8xf32>
    %89 = math.exp %88 : vector<8x8xf32>
    %cst_38 = arith.constant dense<0.000000e+00> : vector<8xf32>
    %90 = vector.multi_reduction <add>, %89, %cst_38 [1] : vector<8x8xf32> to vector<8xf32>
    %91 = vector.shape_cast %90 : vector<8xf32> to vector<8x1xf32>
    %92 = tpu.reciprocal %91 {approx = true} : vector<8x1xf32> -> vector<8x1xf32>
    %93 = vector.broadcast %92 : vector<8x1xf32> to vector<8x8xf32>
    %94 = arith.mulf %89, %93 : vector<8x8xf32>
    %95 = arith.truncf %94 : vector<8x8xf32> to vector<8x8xbf16>
    %cst_39 = arith.constant dense<0.000000e+00> : vector<8x8xf32>
    %96 = tpu.matmul %95, %79, %cst_39 {dimension_numbers = #tpu.dot_dimension_numbers<[1], [0], [0], [1], [0, 0, 1, 1], [], []>} : vector<8x8xbf16>, vector<8x8xbf16>, vector<8x8xf32> -> vector<8x8xf32>
    %97 = arith.truncf %96 : vector<8x8xf32> to vector<8x8xbf16>
    %c0_40 = arith.constant 0 : index
    %c2 = arith.constant 2 : index
    %c0_41 = arith.constant 0 : index
    %c0_42 = arith.constant 0 : index
    %98 = vector.load %arg6[%c0_40, %c2, %c0_41, %c0_42] : memref<1x4x8x32xbf16, #tpu.memory_space<vmem>>, vector<1x1x8x32xbf16>
    %99 = vector.shape_cast %98 : vector<1x1x8x32xbf16> to vector<8x32xbf16>
    %cst_43 = arith.constant dense<0.000000e+00> : vector<8x32xf32>
    %100 = tpu.matmul %97, %99, %cst_43 {dimension_numbers = #tpu.dot_dimension_numbers<[1], [0], [0], [1], [0, 0, 1, 1], [], []>} : vector<8x8xbf16>, vector<8x32xbf16>, vector<8x32xf32> -> vector<8x32xf32>
    %101 = arith.addf %76, %100 : vector<8x32xf32>
    %102 = vector.extract_strided_slice %25 {offsets = [0, 24], sizes = [8, 8], strides = [1, 1]} : vector<8x96xbf16> to vector<8x8xbf16>
    %103 = vector.extract_strided_slice %25 {offsets = [0, 56], sizes = [8, 8], strides = [1, 1]} : vector<8x96xbf16> to vector<8x8xbf16>
    %104 = vector.extract_strided_slice %25 {offsets = [0, 88], sizes = [8, 8], strides = [1, 1]} : vector<8x96xbf16> to vector<8x8xbf16>
    %cst_44 = arith.constant dense<0.000000e+00> : vector<8x8xf32>
    %105 = tpu.matmul %102, %103, %cst_44 {dimension_numbers = #tpu.dot_dimension_numbers<[1], [1], [0], [0], [0, 0, 1, 0], [], []>} : vector<8x8xbf16>, vector<8x8xbf16>, vector<8x8xf32> -> vector<8x8xf32>
    %cst_45 = arith.constant -1.000000e+10 : f32
    %106 = vector.shape_cast %17 : vector<1x8xi1> to vector<1x8xi1>
    %107 = vector.broadcast %106 : vector<1x8xi1> to vector<8x8xi1>
    %108 = vector.broadcast %cst_45 : f32 to vector<8x8xf32>
    %109 = arith.select %107, %105, %108 : vector<8x8xi1>, vector<8x8xf32>
    %cst_46 = arith.constant dense<0xFF800000> : vector<8xf32>
    %110 = vector.multi_reduction <maximumf>, %109, %cst_46 [1] : vector<8x8xf32> to vector<8xf32>
    %111 = vector.shape_cast %110 : vector<8xf32> to vector<8x1xf32>
    %112 = vector.broadcast %111 : vector<8x1xf32> to vector<8x8xf32>
    %113 = arith.subf %109, %112 : vector<8x8xf32>
    %114 = math.exp %113 : vector<8x8xf32>
    %cst_47 = arith.constant dense<0.000000e+00> : vector<8xf32>
    %115 = vector.multi_reduction <add>, %114, %cst_47 [1] : vector<8x8xf32> to vector<8xf32>
    %116 = vector.shape_cast %115 : vector<8xf32> to vector<8x1xf32>
    %117 = tpu.reciprocal %116 {approx = true} : vector<8x1xf32> -> vector<8x1xf32>
    %118 = vector.broadcast %117 : vector<8x1xf32> to vector<8x8xf32>
    %119 = arith.mulf %114, %118 : vector<8x8xf32>
    %120 = arith.truncf %119 : vector<8x8xf32> to vector<8x8xbf16>
    %cst_48 = arith.constant dense<0.000000e+00> : vector<8x8xf32>
    %121 = tpu.matmul %120, %104, %cst_48 {dimension_numbers = #tpu.dot_dimension_numbers<[1], [0], [0], [1], [0, 0, 1, 1], [], []>} : vector<8x8xbf16>, vector<8x8xbf16>, vector<8x8xf32> -> vector<8x8xf32>
    %122 = arith.truncf %121 : vector<8x8xf32> to vector<8x8xbf16>
    %c0_49 = arith.constant 0 : index
    %c3 = arith.constant 3 : index
    %c0_50 = arith.constant 0 : index
    %c0_51 = arith.constant 0 : index
    %123 = vector.load %arg6[%c0_49, %c3, %c0_50, %c0_51] : memref<1x4x8x32xbf16, #tpu.memory_space<vmem>>, vector<1x1x8x32xbf16>
    %124 = vector.shape_cast %123 : vector<1x1x8x32xbf16> to vector<8x32xbf16>
    %cst_52 = arith.constant dense<0.000000e+00> : vector<8x32xf32>
    %125 = tpu.matmul %122, %124, %cst_52 {dimension_numbers = #tpu.dot_dimension_numbers<[1], [0], [0], [1], [0, 0, 1, 1], [], []>} : vector<8x8xbf16>, vector<8x32xbf16>, vector<8x32xf32> -> vector<8x32xf32>
    %126 = arith.addf %101, %125 : vector<8x32xf32>
    %127 = arith.addf %4, %126 : vector<8x32xf32>
    %cst_53 = arith.constant dense<0.000000e+00> : vector<8xf32>
    %128 = vector.multi_reduction <add>, %127, %cst_53 [1] : vector<8x32xf32> to vector<8xf32>
    %129 = vector.shape_cast %128 : vector<8xf32> to vector<8x1xf32>
    %cst_54 = arith.constant 3.200000e+01 : f32
    %130 = vector.broadcast %cst_54 : f32 to vector<8x1xf32>
    %131 = arith.divf %129, %130 : vector<8x1xf32>
    %132 = vector.broadcast %131 : vector<8x1xf32> to vector<8x32xf32>
    %133 = arith.subf %127, %132 : vector<8x32xf32>
    %134 = arith.mulf %133, %133 : vector<8x32xf32>
    %cst_55 = arith.constant dense<0.000000e+00> : vector<8xf32>
    %135 = vector.multi_reduction <add>, %134, %cst_55 [1] : vector<8x32xf32> to vector<8xf32>
    %136 = vector.shape_cast %135 : vector<8xf32> to vector<8x1xf32>
    %cst_56 = arith.constant 3.200000e+01 : f32
    %137 = vector.broadcast %cst_56 : f32 to vector<8x1xf32>
    %138 = arith.divf %136, %137 : vector<8x1xf32>
    %cst_57 = arith.constant 9.99999974E-6 : f32
    %139 = vector.broadcast %cst_57 : f32 to vector<8x1xf32>
    %140 = arith.addf %138, %139 : vector<8x1xf32>
    %141 = math.rsqrt %140 : vector<8x1xf32>
    %142 = vector.broadcast %141 : vector<8x1xf32> to vector<8x32xf32>
    %143 = arith.mulf %133, %142 : vector<8x32xf32>
    %144 = vector.broadcast %9 : vector<1x32xf32> to vector<8x32xf32>
    %145 = arith.mulf %143, %144 : vector<8x32xf32>
    %146 = vector.broadcast %10 : vector<1x32xf32> to vector<8x32xf32>
    %147 = arith.addf %145, %146 : vector<8x32xf32>
    %148 = arith.truncf %147 : vector<8x32xf32> to vector<8x32xbf16>
    %c0_58 = arith.constant 0 : index
    %c0_59 = arith.constant 0 : index
    %c0_60 = arith.constant 0 : index
    %149 = vector.load %arg8[%c0_58, %c0_59, %c0_60] : memref<1x32x64xbf16, #tpu.memory_space<vmem>>, vector<1x32x64xbf16>
    %150 = vector.shape_cast %149 : vector<1x32x64xbf16> to vector<32x64xbf16>
    %cst_61 = arith.constant dense<0.000000e+00> : vector<8x64xf32>
    %151 = tpu.matmul %148, %150, %cst_61 {dimension_numbers = #tpu.dot_dimension_numbers<[1], [0], [0], [1], [0, 0, 1, 1], [], []>} : vector<8x32xbf16>, vector<32x64xbf16>, vector<8x64xf32> -> vector<8x64xf32>
    %c0_62 = arith.constant 0 : index
    %c0_63 = arith.constant 0 : index
    %c0_64 = arith.constant 0 : index
    %152 = vector.load %arg9[%c0_62, %c0_63, %c0_64] : memref<1x1x64xf32, #tpu.memory_space<vmem>>, vector<1x1x64xf32>
    %153 = vector.shape_cast %152 : vector<1x1x64xf32> to vector<1x64xf32>
    %154 = vector.broadcast %153 : vector<1x64xf32> to vector<8x64xf32>
    %155 = arith.addf %151, %154 : vector<8x64xf32>
    %cst_65 = arith.constant 0.000000e+00 : f32
    %156 = vector.broadcast %cst_65 : f32 to vector<8x64xf32>
    %157 = arith.maximumf %155, %156 : vector<8x64xf32>
    %158 = arith.truncf %157 : vector<8x64xf32> to vector<8x64xbf16>
    %c0_66 = arith.constant 0 : index
    %c0_67 = arith.constant 0 : index
    %c0_68 = arith.constant 0 : index
    %159 = vector.load %arg10[%c0_66, %c0_67, %c0_68] : memref<1x64x32xbf16, #tpu.memory_space<vmem>>, vector<1x64x32xbf16>
    %160 = vector.shape_cast %159 : vector<1x64x32xbf16> to vector<64x32xbf16>
    %cst_69 = arith.constant dense<0.000000e+00> : vector<8x32xf32>
    %161 = tpu.matmul %158, %160, %cst_69 {dimension_numbers = #tpu.dot_dimension_numbers<[1], [0], [0], [1], [0, 0, 1, 1], [], []>} : vector<8x64xbf16>, vector<64x32xbf16>, vector<8x32xf32> -> vector<8x32xf32>
    %162 = vector.broadcast %11 : vector<1x32xf32> to vector<8x32xf32>
    %163 = arith.addf %161, %162 : vector<8x32xf32>
    %164 = arith.addf %147, %163 : vector<8x32xf32>
    %cst_70 = arith.constant dense<0.000000e+00> : vector<8xf32>
    %165 = vector.multi_reduction <add>, %164, %cst_70 [1] : vector<8x32xf32> to vector<8xf32>
    %166 = vector.shape_cast %165 : vector<8xf32> to vector<8x1xf32>
    %cst_71 = arith.constant 3.200000e+01 : f32
    %167 = vector.broadcast %cst_71 : f32 to vector<8x1xf32>
    %168 = arith.divf %166, %167 : vector<8x1xf32>
    %169 = vector.broadcast %168 : vector<8x1xf32> to vector<8x32xf32>
    %170 = arith.subf %164, %169 : vector<8x32xf32>
    %171 = arith.mulf %170, %170 : vector<8x32xf32>
    %cst_72 = arith.constant dense<0.000000e+00> : vector<8xf32>
    %172 = vector.multi_reduction <add>, %171, %cst_72 [1] : vector<8x32xf32> to vector<8xf32>
    %173 = vector.shape_cast %172 : vector<8xf32> to vector<8x1xf32>
    %cst_73 = arith.constant 3.200000e+01 : f32
    %174 = vector.broadcast %cst_73 : f32 to vector<8x1xf32>
    %175 = arith.divf %173, %174 : vector<8x1xf32>
    %cst_74 = arith.constant 9.99999974E-6 : f32
    %176 = vector.broadcast %cst_74 : f32 to vector<8x1xf32>
    %177 = arith.addf %175, %176 : vector<8x1xf32>
    %178 = math.rsqrt %177 : vector<8x1xf32>
    %179 = vector.broadcast %178 : vector<8x1xf32> to vector<8x32xf32>
    %180 = arith.mulf %170, %179 : vector<8x32xf32>
    %181 = vector.broadcast %12 : vector<1x32xf32> to vector<8x32xf32>
    %182 = arith.mulf %180, %181 : vector<8x32xf32>
    %183 = vector.broadcast %13 : vector<1x32xf32> to vector<8x32xf32>
    %184 = arith.addf %182, %183 : vector<8x32xf32>
    %c0_75 = arith.constant 0 : index
    %c0_76 = arith.constant 0 : index
    %c0_77 = arith.constant 0 : index
    %185 = vector.load %arg11[%c0_75, %c0_76, %c0_77] : memref<1x8x32xf32, #tpu.memory_space<vmem>>, vector<1x8x32xf32>
    %186 = vector.shape_cast %185 : vector<1x8x32xf32> to vector<8x32xf32>
    %187 = vector.shape_cast %184 : vector<8x32xf32> to vector<1x8x32xf32>
    tpu.vector_store %arg11[%c0_75, %c0_76, %c0_77], %187 {strides = array<i32>} : memref<1x8x32xf32, #tpu.memory_space<vmem>>, vector<1x8x32xf32>,
    return
  }
  func.func @transform_0(%arg0: i32, %arg1: i32) -> (i32, i32, i32) {
    %c0_i32 = arith.constant 0 : i32
    %c0_i32_0 = arith.constant 0 : i32
    %c0_i32_1 = arith.constant 0 : i32
    return %arg0, %c0_i32, %c0_i32_0 : i32, i32, i32
  }
  func.func @transform_1(%arg0: i32, %arg1: i32) -> (i32, i32, i32) {
    %c0_i32 = arith.constant 0 : i32
    %c0_i32_0 = arith.constant 0 : i32
    %c0_i32_1 = arith.constant 0 : i32
    return %arg0, %c0_i32, %c0_i32_0 : i32, i32, i32
  }
  func.func @transform_2(%arg0: i32, %arg1: i32) -> (i32, i32, i32) {
    %c0_i32 = arith.constant 0 : i32
    %c0_i32_0 = arith.constant 0 : i32
    %c0_i32_1 = arith.constant 0 : i32
    return %arg1, %c0_i32, %c0_i32_0 : i32, i32, i32
  }
  func.func @transform_3(%arg0: i32, %arg1: i32) -> (i32, i32, i32) {
    %c0_i32 = arith.constant 0 : i32
    %c0_i32_0 = arith.constant 0 : i32
    %c0_i32_1 = arith.constant 0 : i32
    return %arg1, %c0_i32, %c0_i32_0 : i32, i32, i32
  }
  func.func @transform_4(%arg0: i32, %arg1: i32) -> (i32, i32, i32, i32) {
    %c0_i32 = arith.constant 0 : i32
    %c0_i32_0 = arith.constant 0 : i32
    %c0_i32_1 = arith.constant 0 : i32
    %c0_i32_2 = arith.constant 0 : i32
    return %arg1, %c0_i32, %c0_i32_0, %c0_i32_1 : i32, i32, i32, i32
  }
  func.func @transform_5(%arg0: i32, %arg1: i32) -> (i32, i32, i32) {
    %c0_i32 = arith.constant 0 : i32
    %c0_i32_0 = arith.constant 0 : i32
    %c0_i32_1 = arith.constant 0 : i32
    return %arg1, %c0_i32, %c0_i32_0 : i32, i32, i32
  }
  func.func @transform_6(%arg0: i32, %arg1: i32) -> (i32, i32, i32) {
    %c0_i32 = arith.constant 0 : i32
    %c0_i32_0 = arith.constant 0 : i32
    %c0_i32_1 = arith.constant 0 : i32
    return %arg1, %c0_i32, %c0_i32_0 : i32, i32, i32
  }
  func.func @transform_7(%arg0: i32, %arg1: i32) -> (i32, i32, i32) {
    %c0_i32 = arith.constant 0 : i32
    %c0_i32_0 = arith.constant 0 : i32
    %c0_i32_1 = arith.constant 0 : i32
    return %arg1, %c0_i32, %c0_i32_0 : i32, i32, i32
  }
  func.func @transform_8(%arg0: i32, %arg1: i32) -> (i32, i32, i32) {
    %c0_i32 = arith.constant 0 : i32
    %c0_i32_0 = arith.constant 0 : i32
    %c0_i32_1 = arith.constant 0 : i32
    return %arg1, %c0_i32, %c0_i32_0 : i32, i32, i32
  }
  func.func @transform_9(%arg0: i32, %arg1: i32) -> (i32, i32, i32) {
    %c0_i32 = arith.constant 0 : i32
    %c0_i32_0 = arith.constant 0 : i32
    %c0_i32_1 = arith.constant 0 : i32
    return %arg0, %c0_i32, %c0_i32_0 : i32, i32, i32
  }
}

</mosaic_0001>

<llo_original>
// kernel: tpu_custom_call.1
$region0: #{tpu_custom_call.1}
  #allocation0 [shape = 'u32[]', space=smem, size = 0x4, offset = 0x4, fixed_abs, tag = 'smem constant byte address 0x4 - core index']
  #allocation1 [shape = 'u32[144,128]{1,0:T(1,128)}', space=vmem, size = 0x12000, scoped, tag = 'internal scratch']
  %s0 = inlined_call_operand.hbm [shape: f32[2,8,32], index: 0, kind: input, shape index: {}, may-alias: {0,9}]
  %s1 = inlined_call_operand.vmem [shape: f32[2,1,8], index: 1, kind: input, shape index: {}]
  %s2 = inlined_call_operand.vmem [shape: bf16[2,32,96], index: 2, kind: input, shape index: {}]
  %s3 = inlined_call_operand.vmem [shape: f32[2,1,96], index: 3, kind: input, shape index: {}]
  %s4 = inlined_call_operand.vmem [shape: bf16[2,4,8,32], index: 4, kind: input, shape index: {}]
  %s5 = inlined_call_operand.vmem [shape: f32[2,6,32], index: 5, kind: input, shape index: {}]
  %s6 = inlined_call_operand.vmem [shape: bf16[2,32,64], index: 6, kind: input, shape index: {}]
  %s7 = inlined_call_operand.vmem [shape: f32[2,1,64], index: 7, kind: input, shape index: {}]
  %s8 = inlined_call_operand.vmem [shape: bf16[2,64,32], index: 8, kind: input, shape index: {}]
  %s9 = inlined_call_operand.hbm [shape: f32[2,8,32], index: 9, kind: output, shape index: {}, may-alias: {0,9}]
  %s10 = sld [smem:[#allocation0]]
  $region77: #{tpu_custom_call.1} parent=0
    _
  %s12 = ssub.s32 1, %s10
  %s13 = scalar_select 0, %s12, %s10
  $region1: #{tpu_custom_call.1} parent=0
    #allocation2 [shape = 'u8[8192]{0}', space=vmem, size = 0x2000, scoped, tag = 'input window, operand 0']
    #allocation3 [shape = 's32[2]{0}', space=sflag, size = 0x8, scoped, tag = 'scoped memory for tpu_custom_call.1']
    #allocation4 [shape = 's32[2]{0}', space=sflag, size = 0x8, scoped, tag = 'scoped memory for tpu_custom_call.1']
    #allocation5 [shape = 'u8[8192]{0}', space=vmem, size = 0x2000, scoped, tag = 'output window, operand 0']
    %14 = vsyncpa [#allocation3], 0
    %s15 = scalar_lea.sflag [#allocation3], 1
    %16 = vsyncpa %s15, 0
    %17 = vsyncpa [#allocation4], 0
    %s18 = scalar_lea.sflag [#allocation4], 1
    %19 = vsyncpa %s18, 0
    loop: start=0, step=1, limit=6
    $region2: #{tpu_custom_call.1} parent=1 // loop_pre_header
      _
    $region3: #{tpu_custom_call.1} parent=1 // loop_header
      %s21 = sphi 0, %s25
      %p22 = scmp.ge.s32.totalorder %s21, 6
      %s28 = sphi 0, %s40
      %s29 = sphi 0, %s36
      %s30 = sphi 0, %s28
      %s31 = sphi 0, %s29
      %s32 = sphi 0, %s30
      %s33 = sphi 0, %s31
      %s43 = sphi 0, %s45
      %s46 = sphi 0, %s43
      %s47 = sphi 0, %s46
      %s63 = sphi 0, %s47
      %s69 = sphi 0, %s71
      %s72 = sphi 0, %s69
      %s73 = sphi 0, %s72
      %s89 = sphi 0, %s73
      %s95 = sphi 0, %s97
      %s98 = sphi 0, %s95
      %s99 = sphi 0, %s98
      %s115 = sphi 0, %s99
      %s121 = sphi 0, %s123
      %s124 = sphi 0, %s121
      %s125 = sphi 0, %s124
      %s141 = sphi 0, %s125
      %s147 = sphi 0, %s149
      %s150 = sphi 0, %s147
      %s151 = sphi 0, %s150
      %s167 = sphi 0, %s151
      %s173 = sphi 0, %s175
      %s176 = sphi 0, %s173
      %s177 = sphi 0, %s176
      %s193 = sphi 0, %s177
      %s199 = sphi 0, %s201
      %s202 = sphi 0, %s199
      %s203 = sphi 0, %s202
      %s219 = sphi 0, %s203
      %s225 = sphi 0, %s227
      %s228 = sphi 0, %s225
      %s229 = sphi 0, %s228
      %s245 = sphi 0, %s229
      %s251 = sphi 0, %s253
      %s254 = sphi 0, %s251
      %s255 = sphi 0, %s254
      %s271 = sphi 0, %s255
      %s277 = sphi 0, %s279
      %s280 = sphi 0, %s277
      %s281 = sphi 0, %s280
      %s297 = sphi 0, %s281
    $region4: #{tpu_custom_call.1} parent=1 // loop_header_branch
      %24 = sbr.rel (%p22) target = $region8
    $region5: #{tpu_custom_call.1} parent=1 // loop_body
      %s26 = ssub.s32 %s21, 1
      %s27 = ssub.s32 %s21, 2
      %s34 = sadd.s32 1, %s29
      %p35 = scmp.ge.s32.totalorder %s34, 2
      %s36 = scalar_select %p35, 0, %s34
      %s37 = sadd.s32 1, %s28
      %s38 = scalar_select %p35, %s37, %s28
      %p39 = scmp.ge.s32.totalorder %s38, 2
      %s40 = scalar_select %p39, 0, %s38
      %s41 = ssub.s32 %s28, %s40
      %p42 = scmp.eq.s32.totalorder %s41, 0
      %s44 = sadd.s32 %s43, 1
      %s45 = scalar_select %p42, %s43, %s44
      %p48 = pneg %p42
      %p49 = scmp.eq.s32.totalorder %s21, 3
      %p50 = por %p48, %p49
      %p51 = scmp.ne.s32.totalorder %s43, %s46
      %p52 = scmp.eq.s32.totalorder %s21, 0
      %p53 = por %p51, %p52
      %p54 = scmp.ne.s32.totalorder %s43, %s46
      %p55 = scmp.eq.s32.totalorder %s26, 3
      %p56 = por %p54, %p55
      %p57 = scmp.ne.s32.totalorder %s46, %s47
      %p58 = scmp.eq.s32.totalorder %s26, 0
      %p59 = por %p57, %p58
      %p60 = scmp.ne.s32.totalorder %s46, %s47
      %p61 = scmp.eq.s32.totalorder %s27, 3
      %p62 = por %p60, %p61
      %p64 = scmp.ne.s32.totalorder %s47, %s63
      %p65 = scmp.eq.s32.totalorder %s27, 0
      %p66 = por %p64, %p65
      %s67 = ssub.s32 %s28, %s40
      %p68 = scmp.eq.s32.totalorder %s67, 0
      %s70 = sadd.s32 %s69, 1
      %s71 = scalar_select %p68, %s69, %s70
      %p74 = pneg %p68
      %p75 = scmp.eq.s32.totalorder %s21, 3
      %p76 = por %p74, %p75
      %p77 = scmp.ne.s32.totalorder %s69, %s72
      %p78 = scmp.eq.s32.totalorder %s21, 0
      %p79 = por %p77, %p78
      %p80 = scmp.ne.s32.totalorder %s69, %s72
      %p81 = scmp.eq.s32.totalorder %s26, 3
      %p82 = por %p80, %p81
      %p83 = scmp.ne.s32.totalorder %s72, %s73
      %p84 = scmp.eq.s32.totalorder %s26, 0
      %p85 = por %p83, %p84
      %p86 = scmp.ne.s32.totalorder %s72, %s73
      %p87 = scmp.eq.s32.totalorder %s27, 3
      %p88 = por %p86, %p87
      %p90 = scmp.ne.s32.totalorder %s73, %s89
      %p91 = scmp.eq.s32.totalorder %s27, 0
      %p92 = por %p90, %p91
      %s93 = ssub.s32 %s29, %s36
      %p94 = scmp.eq.s32.totalorder %s93, 0
      %s96 = sadd.s32 %s95, 1
      %s97 = scalar_select %p94, %s95, %s96
      %p100 = pneg %p94
      %p101 = scmp.eq.s32.totalorder %s21, 3
      %p102 = por %p100, %p101
      %p103 = scmp.ne.s32.totalorder %s95, %s98
      %p104 = scmp.eq.s32.totalorder %s21, 0
      %p105 = por %p103, %p104
      %p106 = scmp.ne.s32.totalorder %s95, %s98
      %p107 = scmp.eq.s32.totalorder %s26, 3
      %p108 = por %p106, %p107
      %p109 = scmp.ne.s32.totalorder %s98, %s99
      %p110 = scmp.eq.s32.totalorder %s26, 0
      %p111 = por %p109, %p110
      %p112 = scmp.ne.s32.totalorder %s98, %s99
      %p113 = scmp.eq.s32.totalorder %s27, 3
      %p114 = por %p112, %p113
      %p116 = scmp.ne.s32.totalorder %s99, %s115
      %p117 = scmp.eq.s32.totalorder %s27, 0
      %p118 = por %p116, %p117
      %s119 = ssub.s32 %s29, %s36
      %p120 = scmp.eq.s32.totalorder %s119, 0
      %s122 = sadd.s32 %s121, 1
      %s123 = scalar_select %p120, %s121, %s122
      %p126 = pneg %p120
      %p127 = scmp.eq.s32.totalorder %s21, 3
      %p128 = por %p126, %p127
      %p129 = scmp.ne.s32.totalorder %s121, %s124
      %p130 = scmp.eq.s32.totalorder %s21, 0
      %p131 = por %p129, %p130
      %p132 = scmp.ne.s32.totalorder %s121, %s124
      %p133 = scmp.eq.s32.totalorder %s26, 3
      %p134 = por %p132, %p133
      %p135 = scmp.ne.s32.totalorder %s124, %s125
      %p136 = scmp.eq.s32.totalorder %s26, 0
      %p137 = por %p135, %p136
      %p138 = scmp.ne.s32.totalorder %s124, %s125
      %p139 = scmp.eq.s32.totalorder %s27, 3
      %p140 = por %p138, %p139
      %p142 = scmp.ne.s32.totalorder %s125, %s141
      %p143 = scmp.eq.s32.totalorder %s27, 0
      %p144 = por %p142, %p143
      %s145 = ssub.s32 %s29, %s36
      %p146 = scmp.eq.s32.totalorder %s145, 0
      %s148 = sadd.s32 %s147, 1
      %s149 = scalar_select %p146, %s147, %s148
      %p152 = pneg %p146
      %p153 = scmp.eq.s32.totalorder %s21, 3
      %p154 = por %p152, %p153
      %p155 = scmp.ne.s32.totalorder %s147, %s150
      %p156 = scmp.eq.s32.totalorder %s21, 0
      %p157 = por %p155, %p156
      %p158 = scmp.ne.s32.totalorder %s147, %s150
      %p159 = scmp.eq.s32.totalorder %s26, 3
      %p160 = por %p158, %p159
      %p161 = scmp.ne.s32.totalorder %s150, %s151
      %p162 = scmp.eq.s32.totalorder %s26, 0
      %p163 = por %p161, %p162
      %p164 = scmp.ne.s32.totalorder %s150, %s151
      %p165 = scmp.eq.s32.totalorder %s27, 3
      %p166 = por %p164, %p165
      %p168 = scmp.ne.s32.totalorder %s151, %s167
      %p169 = scmp.eq.s32.totalorder %s27, 0
      %p170 = por %p168, %p169
      %s171 = ssub.s32 %s29, %s36
      %p172 = scmp.eq.s32.totalorder %s171, 0
      %s174 = sadd.s32 %s173, 1
      %s175 = scalar_select %p172, %s173, %s174
      %p178 = pneg %p172
      %p179 = scmp.eq.s32.totalorder %s21, 3
      %p180 = por %p178, %p179
      %p181 = scmp.ne.s32.totalorder %s173, %s176
      %p182 = scmp.eq.s32.totalorder %s21, 0
      %p183 = por %p181, %p182
      %p184 = scmp.ne.s32.totalorder %s173, %s176
      %p185 = scmp.eq.s32.totalorder %s26, 3
      %p186 = por %p184, %p185
      %p187 = scmp.ne.s32.totalorder %s176, %s177
      %p188 = scmp.eq.s32.totalorder %s26, 0
      %p189 = por %p187, %p188
      %p190 = scmp.ne.s32.totalorder %s176, %s177
      %p191 = scmp.eq.s32.totalorder %s27, 3
      %p192 = por %p190, %p191
      %p194 = scmp.ne.s32.totalorder %s177, %s193
      %p195 = scmp.eq.s32.totalorder %s27, 0
      %p196 = por %p194, %p195
      %s197 = ssub.s32 %s29, %s36
      %p198 = scmp.eq.s32.totalorder %s197, 0
      %s200 = sadd.s32 %s199, 1
      %s201 = scalar_select %p198, %s199, %s200
      %p204 = pneg %p198
      %p205 = scmp.eq.s32.totalorder %s21, 3
      %p206 = por %p204, %p205
      %p207 = scmp.ne.s32.totalorder %s199, %s202
      %p208 = scmp.eq.s32.totalorder %s21, 0
      %p209 = por %p207, %p208
      %p210 = scmp.ne.s32.totalorder %s199, %s202
      %p211 = scmp.eq.s32.totalorder %s26, 3
      %p212 = por %p210, %p211
      %p213 = scmp.ne.s32.totalorder %s202, %s203
      %p214 = scmp.eq.s32.totalorder %s26, 0
      %p215 = por %p213, %p214
      %p216 = scmp.ne.s32.totalorder %s202, %s203
      %p217 = scmp.eq.s32.totalorder %s27, 3
      %p218 = por %p216, %p217
      %p220 = scmp.ne.s32.totalorder %s203, %s219
      %p221 = scmp.eq.s32.totalorder %s27, 0
      %p222 = por %p220, %p221
      %s223 = ssub.s32 %s29, %s36
      %p224 = scmp.eq.s32.totalorder %s223, 0
      %s226 = sadd.s32 %s225, 1
      %s227 = scalar_select %p224, %s225, %s226
      %p230 = pneg %p224
      %p231 = scmp.eq.s32.totalorder %s21, 3
      %p232 = por %p230, %p231
      %p233 = scmp.ne.s32.totalorder %s225, %s228
      %p234 = scmp.eq.s32.totalorder %s21, 0
      %p235 = por %p233, %p234
      %p236 = scmp.ne.s32.totalorder %s225, %s228
      %p237 = scmp.eq.s32.totalorder %s26, 3
      %p238 = por %p236, %p237
      %p239 = scmp.ne.s32.totalorder %s228, %s229
      %p240 = scmp.eq.s32.totalorder %s26, 0
      %p241 = por %p239, %p240
      %p242 = scmp.ne.s32.totalorder %s228, %s229
      %p243 = scmp.eq.s32.totalorder %s27, 3
      %p244 = por %p242, %p243
      %p246 = scmp.ne.s32.totalorder %s229, %s245
      %p247 = scmp.eq.s32.totalorder %s27, 0
      %p248 = por %p246, %p247
      %s249 = ssub.s32 %s29, %s36
      %p250 = scmp.eq.s32.totalorder %s249, 0
      %s252 = sadd.s32 %s251, 1
      %s253 = scalar_select %p250, %s251, %s252
      %p256 = pneg %p250
      %p257 = scmp.eq.s32.totalorder %s21, 3
      %p258 = por %p256, %p257
      %p259 = scmp.ne.s32.totalorder %s251, %s254
      %p260 = scmp.eq.s32.totalorder %s21, 0
      %p261 = por %p259, %p260
      %p262 = scmp.ne.s32.totalorder %s251, %s254
      %p263 = scmp.eq.s32.totalorder %s26, 3
      %p264 = por %p262, %p263
      %p265 = scmp.ne.s32.totalorder %s254, %s255
      %p266 = scmp.eq.s32.totalorder %s26, 0
      %p267 = por %p265, %p266
      %p268 = scmp.ne.s32.totalorder %s254, %s255
      %p269 = scmp.eq.s32.totalorder %s27, 3
      %p270 = por %p268, %p269
      %p272 = scmp.ne.s32.totalorder %s255, %s271
      %p273 = scmp.eq.s32.totalorder %s27, 0
      %p274 = por %p272, %p273
      %s275 = ssub.s32 %s28, %s40
      %p276 = scmp.eq.s32.totalorder %s275, 0
      %s278 = sadd.s32 %s277, 1
      %s279 = scalar_select %p276, %s277, %s278
      %p282 = pneg %p276
      %p283 = scmp.eq.s32.totalorder %s21, 3
      %p284 = por %p282, %p283
      %p285 = scmp.ne.s32.totalorder %s277, %s280
      %p286 = scmp.eq.s32.totalorder %s21, 0
      %p287 = por %p285, %p286
      %p288 = scmp.ne.s32.totalorder %s277, %s280
      %p289 = scmp.eq.s32.totalorder %s26, 3
      %p290 = por %p288, %p289
      %p291 = scmp.ne.s32.totalorder %s280, %s281
      %p292 = scmp.eq.s32.totalorder %s26, 0
      %p293 = por %p291, %p292
      %p294 = scmp.ne.s32.totalorder %s280, %s281
      %p295 = scmp.eq.s32.totalorder %s27, 3
      %p296 = por %p294, %p295
      %p298 = scmp.ne.s32.totalorder %s281, %s297
      %p299 = scmp.eq.s32.totalorder %s27, 0
      %p300 = por %p298, %p299
      %p301 = scmp.le.s32.totalorder 1, %s21
      %p302 = scmp.lt.s32.totalorder %s21, 5
      %p303 = pnand %p301, %p302
      %p304 = pneg %p303
      // Predicated region
      $region9: #{tpu_custom_call.1} parent=5 // pred_check
        _
      $region10: #{tpu_custom_call.1} parent=5 // pred_check_branch
        %306 = sbr.rel (%p303) target = $region12
      $region11: #{tpu_custom_call.1} parent=5 // pred_region
        %s307 = ssub.s32 %s21, 1
      $region12: #{tpu_custom_call.1} parent=5 // pred_fallthru
        _
      %p308 = scmp.lt.s32.totalorder %s21, 4
      // Predicated region
      $region13: #{tpu_custom_call.1} parent=5 // pred_check
        %p309 = pneg %p308
      $region14: #{tpu_custom_call.1} parent=5 // pred_check_branch
        %311 = sbr.rel (%p309) target = $region16
      $region15: #{tpu_custom_call.1} parent=5 // pred_region
        // Predicated region
        $region17: #{tpu_custom_call.1} parent=15 // pred_check
          %p312 = pneg %p53
        $region18: #{tpu_custom_call.1} parent=15 // pred_check_branch
          %314 = sbr.rel (%p312) target = $region20
        $region19: #{tpu_custom_call.1} parent=15 // pred_region
          %s315 = sand.u32 %s43, 1
          %s316 = scalar_lea.sflag [#allocation3], %s315
          %s317 = sand.u32 %s43, 1
          %s318 = smul.addr %s317, 8
          %s319 = scalar_lea.vmem [#allocation2], %s318
          %s321 = ssub.s32 128, 128
          %322 = vsyncadd %s316, %s321
          %s323 = smul.addr %s28, 128
          %s324 = scalar_lea.hbm %s0, %s323
          %s326 = sshll.u32 %s319, 4
          %s327 = int_to_ptr.vmem [resolvable:$true] %s326
          %329 = dma.hbm_to_vmem [thread:$0]  %s324, 128, %s327, %s316
        $region20: #{tpu_custom_call.1} parent=15 // pred_fallthru
          _
        // Predicated region
        $region21: #{tpu_custom_call.1} parent=15 // pred_check
          %p330 = pneg %p79
        $region22: #{tpu_custom_call.1} parent=15 // pred_check_branch
          %332 = sbr.rel (%p330) target = $region24
        $region23: #{tpu_custom_call.1} parent=15 // pred_region
          %p333 = scmp.lt.s32.totalorder %s28, 1
          %s334 = scalar_select %p333, %s28, 1
          %s335 = scalar_lea.vmem %s1, %s334
        $region24: #{tpu_custom_call.1} parent=15 // pred_fallthru
          _
        // Predicated region
        $region25: #{tpu_custom_call.1} parent=15 // pred_check
          %p336 = pneg %p105
        $region26: #{tpu_custom_call.1} parent=15 // pred_check_branch
          %338 = sbr.rel (%p336) target = $region28
        $region27: #{tpu_custom_call.1} parent=15 // pred_region
          %p339 = scmp.lt.s32.totalorder %s29, 1
          %s340 = scalar_select %p339, %s29, 1
          %s341 = smul.addr %s340, 4
          %s342 = smul.addr %s341, 4
          %s343 = scalar_lea.vmem %s2, %s342
        $region28: #{tpu_custom_call.1} parent=15 // pred_fallthru
          _
        // Predicated region
        $region29: #{tpu_custom_call.1} parent=15 // pred_check
          %p344 = pneg %p131
        $region30: #{tpu_custom_call.1} parent=15 // pred_check_branch
          %346 = sbr.rel (%p344) target = $region32
        $region31: #{tpu_custom_call.1} parent=15 // pred_region
          %p347 = scmp.lt.s32.totalorder %s29, 1
          %s348 = scalar_select %p347, %s29, 1
          %s349 = scalar_lea.vmem %s3, %s348
        $region32: #{tpu_custom_call.1} parent=15 // pred_fallthru
          _
        // Predicated region
        $region33: #{tpu_custom_call.1} parent=15 // pred_check
          %p350 = pneg %p157
        $region34: #{tpu_custom_call.1} parent=15 // pred_check_branch
          %352 = sbr.rel (%p350) target = $region36
        $region35: #{tpu_custom_call.1} parent=15 // pred_region
          %p353 = scmp.lt.s32.totalorder %s29, 1
          %s354 = scalar_select %p353, %s29, 1
          %s355 = smul.addr %s354, 4
          %s356 = smul.addr %s355, 4
          %s357 = scalar_lea.vmem %s4, %s356
        $region36: #{tpu_custom_call.1} parent=15 // pred_fallthru
          _
        // Predicated region
        $region37: #{tpu_custom_call.1} parent=15 // pred_check
          %p358 = pneg %p183
        $region38: #{tpu_custom_call.1} parent=15 // pred_check_branch
          %360 = sbr.rel (%p358) target = $region40
        $region39: #{tpu_custom_call.1} parent=15 // pred_region
          %p361 = scmp.lt.s32.totalorder %s29, 1
          %s362 = scalar_select %p361, %s29, 1
          %s363 = smul.addr %s362, 8
          %s364 = scalar_lea.vmem %s5, %s363
        $region40: #{tpu_custom_call.1} parent=15 // pred_fallthru
          _
        // Predicated region
        $region41: #{tpu_custom_call.1} parent=15 // pred_check
          %p365 = pneg %p209
        $region42: #{tpu_custom_call.1} parent=15 // pred_check_branch
          %367 = sbr.rel (%p365) target = $region44
        $region43: #{tpu_custom_call.1} parent=15 // pred_region
          %p368 = scmp.lt.s32.totalorder %s29, 1
          %s369 = scalar_select %p368, %s29, 1
          %s370 = smul.addr %s369, 4
          %s371 = smul.addr %s370, 4
          %s372 = scalar_lea.vmem %s6, %s371
        $region44: #{tpu_custom_call.1} parent=15 // pred_fallthru
          _
        // Predicated region
        $region45: #{tpu_custom_call.1} parent=15 // pred_check
          %p373 = pneg %p235
        $region46: #{tpu_custom_call.1} parent=15 // pred_check_branch
          %375 = sbr.rel (%p373) target = $region48
        $region47: #{tpu_custom_call.1} parent=15 // pred_region
          %p376 = scmp.lt.s32.totalorder %s29, 1
          %s377 = scalar_select %p376, %s29, 1
          %s378 = scalar_lea.vmem %s7, %s377
        $region48: #{tpu_custom_call.1} parent=15 // pred_fallthru
          _
        // Predicated region
        $region49: #{tpu_custom_call.1} parent=15 // pred_check
          %p379 = pneg %p261
        $region50: #{tpu_custom_call.1} parent=15 // pred_check_branch
          %381 = sbr.rel (%p379) target = $region52
        $region51: #{tpu_custom_call.1} parent=15 // pred_region
          %p382 = scmp.lt.s32.totalorder %s29, 1
          %s383 = scalar_select %p382, %s29, 1
          %s384 = smul.addr %s383, 8
          %s385 = smul.addr %s384, 4
          %s386 = scalar_lea.vmem %s8, %s385
        $region52: #{tpu_custom_call.1} parent=15 // pred_fallthru
          _
      $region16: #{tpu_custom_call.1} parent=5 // pred_fallthru
        _
      %p387 = scmp.le.s32.totalorder 1, %s21
      %p388 = scmp.lt.s32.totalorder %s21, 5
      %p389 = pnand %p387, %p388
      %p390 = pneg %p389
      // Predicated region
      $region53: #{tpu_custom_call.1} parent=5 // pred_check
        _
      $region54: #{tpu_custom_call.1} parent=5 // pred_check_branch
        %392 = sbr.rel (%p389) target = $region56
      $region55: #{tpu_custom_call.1} parent=5 // pred_region
        %s393 = ssub.s32 %s21, 1
        %s394 = sand.u32 %s46, 1
        %s395 = scalar_lea.sflag [#allocation3], %s394
        %s396 = sand.u32 %s46, 1
        %s397 = smul.addr %s396, 8
        %s398 = scalar_lea.vmem [#allocation2], %s397
        // Predicated region
        $region57: #{tpu_custom_call.1} parent=55 // pred_check
          %p399 = pneg %p59
        $region58: #{tpu_custom_call.1} parent=55 // pred_check_branch
          %401 = sbr.rel (%p399) target = $region60
        $region59: #{tpu_custom_call.1} parent=55 // pred_region
          %402 = dma.done %s395, 128
        $region60: #{tpu_custom_call.1} parent=55 // pred_fallthru
          _
        %s403 = sand.u32 %s46, 1
        %s404 = scalar_lea.sflag [#allocation3], %s403
        %s405 = sand.u32 %s46, 1
        %s406 = smul.addr %s405, 8
        %s407 = scalar_lea.vmem [#allocation2], %s406
        %p408 = pneg %p59
        %p409 = pneg %p56
        %p410 = scmp.lt.s32.totalorder %s30, 1
        %s411 = scalar_select %p410, %s30, 1
        %s412 = scalar_lea.vmem %s1, %s411
        %p413 = pneg %p85
        %p414 = pneg %p82
        %p415 = scmp.lt.s32.totalorder %s31, 1
        %s416 = scalar_select %p415, %s31, 1
        %s417 = smul.addr %s416, 4
        %s418 = smul.addr %s417, 4
        %s419 = scalar_lea.vmem %s2, %s418
        %p420 = pneg %p111
        %p421 = pneg %p108
        %p422 = scmp.lt.s32.totalorder %s31, 1
        %s423 = scalar_select %p422, %s31, 1
        %s424 = scalar_lea.vmem %s3, %s423
        %p425 = pneg %p137
        %p426 = pneg %p134
        %p427 = scmp.lt.s32.totalorder %s31, 1
        %s428 = scalar_select %p427, %s31, 1
        %s429 = smul.addr %s428, 4
        %s430 = smul.addr %s429, 4
        %s431 = scalar_lea.vmem %s4, %s430
        %p432 = pneg %p163
        %p433 = pneg %p160
        %p434 = scmp.lt.s32.totalorder %s31, 1
        %s435 = scalar_select %p434, %s31, 1
        %s436 = smul.addr %s435, 8
        %s437 = scalar_lea.vmem %s5, %s436
        %p438 = pneg %p189
        %p439 = pneg %p186
        %p440 = scmp.lt.s32.totalorder %s31, 1
        %s441 = scalar_select %p440, %s31, 1
        %s442 = smul.addr %s441, 4
        %s443 = smul.addr %s442, 4
        %s444 = scalar_lea.vmem %s6, %s443
        %p445 = pneg %p215
        %p446 = pneg %p212
        %p447 = scmp.lt.s32.totalorder %s31, 1
        %s448 = scalar_select %p447, %s31, 1
        %s449 = scalar_lea.vmem %s7, %s448
        %p450 = pneg %p241
        %p451 = pneg %p238
        %p452 = scmp.lt.s32.totalorder %s31, 1
        %s453 = scalar_select %p452, %s31, 1
        %s454 = smul.addr %s453, 8
        %s455 = smul.addr %s454, 4
        %s456 = scalar_lea.vmem %s8, %s455
        %p457 = pneg %p267
        %p458 = pneg %p264
        %p459 = pneg %p293
        %p460 = pneg %p290
        %s461 = sand.u32 %s280, 1
        %s462 = scalar_lea.sflag [#allocation4], %s461
        %s463 = sand.u32 %s280, 1
        %s464 = smul.addr %s463, 8
        %s465 = scalar_lea.vmem [#allocation5], %s464
        %p466 = scmp.lt.s32.totalorder %s30, 1
        %s467 = scalar_select %p466, %s30, 1
        %s468 = scalar_lea.vmem %s1, %s467
        %p469 = scmp.lt.s32.totalorder %s31, 1
        %s470 = scalar_select %p469, %s31, 1
        %s471 = smul.addr %s470, 4
        %s472 = smul.addr %s471, 4
        %s473 = scalar_lea.vmem %s2, %s472
        %p474 = scmp.lt.s32.totalorder %s31, 1
        %s475 = scalar_select %p474, %s31, 1
        %s476 = scalar_lea.vmem %s3, %s475
        %p477 = scmp.lt.s32.totalorder %s31, 1
        %s478 = scalar_select %p477, %s31, 1
        %s479 = smul.addr %s478, 4
        %s480 = smul.addr %s479, 4
        %s481 = scalar_lea.vmem %s4, %s480
        %p482 = scmp.lt.s32.totalorder %s31, 1
        %s483 = scalar_select %p482, %s31, 1
        %s484 = smul.addr %s483, 8
        %s485 = scalar_lea.vmem %s5, %s484
        %p486 = scmp.lt.s32.totalorder %s31, 1
        %s487 = scalar_select %p486, %s31, 1
        %s488 = smul.addr %s487, 4
        %s489 = smul.addr %s488, 4
        %s490 = scalar_lea.vmem %s6, %s489
        %p491 = scmp.lt.s32.totalorder %s31, 1
        %s492 = scalar_select %p491, %s31, 1
        %s493 = scalar_lea.vmem %s7, %s492
        %p494 = scmp.lt.s32.totalorder %s31, 1
        %s495 = scalar_select %p494, %s31, 1
        %s496 = smul.addr %s495, 8
        %s497 = smul.addr %s496, 4
        %s498 = scalar_lea.vmem %s8, %s497
        %p500 = scmp.eq.s32.totalorder %s31, 0
        // Predicated region
        $region61: #{tpu_custom_call.1} parent=55 // pred_check
          %p501 = pneg %p500
        $region62: #{tpu_custom_call.1} parent=55 // pred_check_branch
          %503 = sbr.rel (%p501) target = $region64
        $region63: #{tpu_custom_call.1} parent=55 // pred_region
          %v504 = vld [vmem:[%s398] sm:$0xff]
          %vm505 = vcmask 261120
          %506 = vst.msk [vmem:[%s465] sm:$0xff] %vm505, %v504
        $region64: #{tpu_custom_call.1} parent=55 // pred_fallthru
          _
        %v507 = vld [vmem:[%s465] sm:$0xff]
        %v508 = vpack.c.bf16 %v507, %v507
        %v509 = vld [vmem:[%s485] sm:$0x3f]
        %v510 = vld [vmem:[%s468] sm:$0x1]
        %vm511 = vcmp.ne.f32.partialorder %v510, 0.0
        %v512 = vld [vmem:[%s473] sm:$0xf]
        %v513 = vld [vmem:[%s473 + $0x4] sm:$0xf]
        %v514 = vld [vmem:[%s473 + $0x8] sm:$0xf]
        %v515 = vld [vmem:[%s473 + $0xc] sm:$0xf]
        %v516 = vld [vmem:[%s476] sm:$0x1]
        %v518 = vlaneseq
        %v519 = vshrl.u32 %v518, 7
        %v520 = vsub.s32 0, %v519
        %v521 = vrot.slane %v516, %v520
        %v527 = vunpack.c.l.b16 %v512
        %v528 = vunpack.c.l.b16 %v513
        %v529 = vunpack.c.l.b16 %v514
        %v530 = vunpack.c.l.b16 %v515
        %v531 = vpack.c.b16 %v528, %v527
        %v532 = vpack.c.b16 %v530, %v529
        %vm535 = vcmask 261120
        %v537 = vsel %vm535, %v508, 0
        %539 = vmatprep.subr.bf16.mxu0 0
        %540 = vmatpush1.bf16.msra.mxu0 %v531
        %541 = vmatprep.subr.bf16.mxu0 0
        %542 = vmatpush1.bf16.msra.mxu0 %v532
        %543 = vmatprep.subr.bf16.mxu0 0
        %544 = vmatpush1.bf16.msra.mxu0 0
        %545 = vmatprep.subr.bf16.mxu0 0
        %546 = vmatpush1.bf16.msra.mxu0 0
        %547 = vmatprep.subr.bf16.mxu0 0
        %548 = vmatpush1.bf16.msra.mxu0 0
        %549 = vmatprep.subr.bf16.mxu0 0
        %550 = vmatpush1.bf16.msra.mxu0 0
        %551 = vmatprep.subr.bf16.mxu0 0
        %552 = vmatpush1.bf16.msra.mxu0 0
        %553 = vmatprep.subr.bf16.mxu0 0
        %554 = vmatpush1.bf16.msra.mxu0 0
        %555 = vmatprep.subr.bf16.mxu0 0
        %556 = vmatpush1.bf16.msra.mxu0 0
        %557 = vmatprep.subr.bf16.mxu0 0
        %558 = vmatpush1.bf16.msra.mxu0 0
        %559 = vmatprep.subr.bf16.mxu0 0
        %560 = vmatpush1.bf16.msra.mxu0 0
        %561 = vmatprep.subr.bf16.mxu0 0
        %562 = vmatpush1.bf16.msra.mxu0 0
        %563 = vmatprep.subr.bf16.mxu0 0
        %564 = vmatpush1.bf16.msra.mxu0 0
        %565 = vmatprep.subr.bf16.mxu0 0
        %566 = vmatpush1.bf16.msra.mxu0 0
        %567 = vmatprep.subr.bf16.mxu0 0
        %568 = vmatpush1.bf16.msra.mxu0 0
        %569 = vmatprep.subr.bf16.mxu0 0
        %570 = vmatpush1.bf16.msra.mxu0 0
        %571 = vmatprep.mubr.bf16.mxu0 0
        %572 = vmatmul.mubr.bf16.gmra.mrb[0].mxu0 %v537
        %v573 = vpop.f32.mrb[0].mxu0
        %v574 = vadd.f32 %v521, %v573
        %v575 = vpop.f32.mrb[0].mxu0
        %v576 = vpop.f32.mrb[0].mxu0
        %v577 = vpop.f32.mrb[0].mxu0
        %578 = vdwg.mxu0
        %v579 = vpack.c.bf16 %v574, %v574
        %581 = vrot.lane.b32.xlu0 %v579, 96
        %v582 = vpop.permute.xlu0 %581
        %vm583 = vcmask 64512
        %v585 = vsel %vm583, %v579, 0
        %v588 = vsel %vm583, %v582, 0
        %590 = vmatprep.subr.bf16.mxu0 0
        %591 = vmatpush1.bf16.xpose.msra.mxu0 %v588
        %592 = vmatprep.subr.bf16.mxu0 0
        %593 = vmatpush1.bf16.xpose.msra.mxu0 0
        %594 = vmatprep.subr.bf16.mxu0 0
        %595 = vmatpush1.bf16.xpose.msra.mxu0 0
        %596 = vmatprep.subr.bf16.mxu0 0
        %597 = vmatpush1.bf16.xpose.msra.mxu0 0
        %598 = vmatprep.subr.bf16.mxu0 0
        %599 = vmatpush1.bf16.xpose.msra.mxu0 0
        %600 = vmatprep.subr.bf16.mxu0 0
        %601 = vmatpush1.bf16.xpose.msra.mxu0 0
        %602 = vmatprep.subr.bf16.mxu0 0
        %603 = vmatpush1.bf16.xpose.msra.mxu0 0
        %604 = vmatprep.subr.bf16.mxu0 0
        %605 = vmatpush1.bf16.xpose.msra.mxu0 0
        %606 = vmatprep.subr.bf16.mxu0 0
        %607 = vmatpush1.bf16.xpose.msra.mxu0 0
        %608 = vmatprep.subr.bf16.mxu0 0
        %609 = vmatpush1.bf16.xpose.msra.mxu0 0
        %610 = vmatprep.subr.bf16.mxu0 0
        %611 = vmatpush1.bf16.xpose.msra.mxu0 0
        %612 = vmatprep.subr.bf16.mxu0 0
        %613 = vmatpush1.bf16.xpose.msra.mxu0 0
        %614 = vmatprep.subr.bf16.mxu0 0
        %615 = vmatpush1.bf16.xpose.msra.mxu0 0
        %616 = vmatprep.subr.bf16.mxu0 0
        %617 = vmatpush1.bf16.xpose.msra.mxu0 0
        %618 = vmatprep.subr.bf16.mxu0 0
        %619 = vmatpush1.bf16.xpose.msra.mxu0 0
        %620 = vmatprep.subr.bf16.mxu0 0
        %621 = vmatpush1.bf16.xpose.msra.mxu0 0
        %622 = vmatprep.mubr.bf16.mxu0 0
        %623 = vmatmul.mubr.bf16.gmra.mrb[0].mxu0 %v585
        %v624 = vpop.f32.mrb[0].mxu0
        %v625 = vadd.f32 0.0, %v624
        %v626 = vpop.f32.mrb[0].mxu0
        %v627 = vpop.f32.mrb[0].mxu0
        %v628 = vpop.f32.mrb[0].mxu0
        %629 = vdwg.mxu0
        %v630 = vsel %vm511, 1, 0
        %v631 = vlaneseq
        %v632 = vshrl.u32 %v631, 7
        %v633 = vsub.s32 0, %v632
        %v634 = vrot.slane %v630, %v633
        %vm635 = vcmp.eq.s32.totalorder %v634, 1
        %v636 = vsel %vm635, %v625, -1e+10
        %v637 = vsel %vm583, %v636, -inf
        %638 = vmax.xlane.f32.xlu0 %v637
        %v639 = vpop.xlane.xlu0 %638
        %v640 = vsub.f32 %v636, %v639
        %v641 = vmul.f32 %v640, 1.442695
        %v642 = vpow.pop %v641
        %v643 = vsel %vm583, %v642, 0.0
        %644 = vadd.xlane.f32.xlu0 %v643
        %v645 = vpop.xlane.xlu0 %644
        %v646 = vrcp.pop %v645
        %v647 = vmul.f32 %v642, %v646
        %v648 = vpack.c.bf16 %v647, %v647
        %649 = vrot.lane.b32.xlu0 %v579, 64
        %v650 = vpop.permute.xlu0 %649
        %v652 = vsel %vm583, %v648, 0
        %vm654 = vcmask 1043456
        %v656 = vsel %vm654, %v650, 0
        %658 = vmatprep.subr.bf16.mxu0 0
        %659 = vmatpush1.bf16.msra.mxu0 %v656
        %660 = vmatprep.subr.bf16.mxu0 0
        %661 = vmatpush1.bf16.msra.mxu0 0
        %662 = vmatprep.subr.bf16.mxu0 0
        %663 = vmatpush1.bf16.msra.mxu0 0
        %664 = vmatprep.subr.bf16.mxu0 0
        %665 = vmatpush1.bf16.msra.mxu0 0
        %666 = vmatprep.subr.bf16.mxu0 0
        %667 = vmatpush1.bf16.msra.mxu0 0
        %668 = vmatprep.subr.bf16.mxu0 0
        %669 = vmatpush1.bf16.msra.mxu0 0
        %670 = vmatprep.subr.bf16.mxu0 0
        %671 = vmatpush1.bf16.msra.mxu0 0
        %672 = vmatprep.subr.bf16.mxu0 0
        %673 = vmatpush1.bf16.msra.mxu0 0
        %674 = vmatprep.subr.bf16.mxu0 0
        %675 = vmatpush1.bf16.msra.mxu0 0
        %676 = vmatprep.subr.bf16.mxu0 0
        %677 = vmatpush1.bf16.msra.mxu0 0
        %678 = vmatprep.subr.bf16.mxu0 0
        %679 = vmatpush1.bf16.msra.mxu0 0
        %680 = vmatprep.subr.bf16.mxu0 0
        %681 = vmatpush1.bf16.msra.mxu0 0
        %682 = vmatprep.subr.bf16.mxu0 0
        %683 = vmatpush1.bf16.msra.mxu0 0
        %684 = vmatprep.subr.bf16.mxu0 0
        %685 = vmatpush1.bf16.msra.mxu0 0
        %686 = vmatprep.subr.bf16.mxu0 0
        %687 = vmatpush1.bf16.msra.mxu0 0
        %688 = vmatprep.subr.bf16.mxu0 0
        %689 = vmatpush1.bf16.msra.mxu0 0
        %690 = vmatprep.mubr.bf16.mxu0 0
        %691 = vmatmul.mubr.bf16.gmra.mrb[0].mxu0 %v652
        %v692 = vpop.f32.mrb[0].mxu0
        %v693 = vadd.f32 0.0, %v692
        %v694 = vpop.f32.mrb[0].mxu0
        %v695 = vpop.f32.mrb[0].mxu0
        %v696 = vpop.f32.mrb[0].mxu0
        %697 = vdwg.mxu0
        %v698 = vpack.c.bf16 %v693, %v693
        %v699 = vld [vmem:[%s481] sm:$0xf]
        %v701 = vsel %vm583, %v698, 0
        %v704 = vsel %vm654, %v699, 0
        %706 = vmatprep.subr.bf16.mxu0 0
        %707 = vmatpush1.bf16.msra.mxu0 %v704
        %708 = vmatprep.subr.bf16.mxu0 0
        %709 = vmatpush1.bf16.msra.mxu0 0
        %710 = vmatprep.subr.bf16.mxu0 0
        %711 = vmatpush1.bf16.msra.mxu0 0
        %712 = vmatprep.subr.bf16.mxu0 0
        %713 = vmatpush1.bf16.msra.mxu0 0
        %714 = vmatprep.subr.bf16.mxu0 0
        %715 = vmatpush1.bf16.msra.mxu0 0
        %716 = vmatprep.subr.bf16.mxu0 0
        %717 = vmatpush1.bf16.msra.mxu0 0
        %718 = vmatprep.subr.bf16.mxu0 0
        %719 = vmatpush1.bf16.msra.mxu0 0
        %720 = vmatprep.subr.bf16.mxu0 0
        %721 = vmatpush1.bf16.msra.mxu0 0
        %722 = vmatprep.subr.bf16.mxu0 0
        %723 = vmatpush1.bf16.msra.mxu0 0
        %724 = vmatprep.subr.bf16.mxu0 0
        %725 = vmatpush1.bf16.msra.mxu0 0
        %726 = vmatprep.subr.bf16.mxu0 0
        %727 = vmatpush1.bf16.msra.mxu0 0
        %728 = vmatprep.subr.bf16.mxu0 0
        %729 = vmatpush1.bf16.msra.mxu0 0
        %730 = vmatprep.subr.bf16.mxu0 0
        %731 = vmatpush1.bf16.msra.mxu0 0
        %732 = vmatprep.subr.bf16.mxu0 0
        %733 = vmatpush1.bf16.msra.mxu0 0
        %734 = vmatprep.subr.bf16.mxu0 0
        %735 = vmatpush1.bf16.msra.mxu0 0
        %736 = vmatprep.subr.bf16.mxu0 0
        %737 = vmatpush1.bf16.msra.mxu0 0
        %738 = vmatprep.mubr.bf16.mxu0 0
        %739 = vmatmul.mubr.bf16.gmra.mrb[0].mxu0 %v701
        %v740 = vpop.f32.mrb[0].mxu0
        %v741 = vadd.f32 0.0, %v740
        %v742 = vpop.f32.mrb[0].mxu0
        %v743 = vpop.f32.mrb[0].mxu0
        %v744 = vpop.f32.mrb[0].mxu0
        %745 = vdwg.mxu0
        %v746 = vlaneseq
        %v747 = vshrl.u32 %v746, 7
        %v748 = vsub.s32 0, %v747
        %v749 = vrot.slane %v509, %v748
        %v750 = vadd.f32 %v749, %v741
        %751 = vrot.lane.b32.xlu0 %v579, 120
        %v752 = vpop.permute.xlu0 %751
        %753 = vrot.lane.b32.xlu0 %v579, 88
        %v754 = vpop.permute.xlu0 %753
        %v756 = vsel %vm583, %v752, 0
        %v759 = vsel %vm583, %v754, 0
        %761 = vmatprep.subr.bf16.mxu0 0
        %762 = vmatpush1.bf16.xpose.msra.mxu0 %v759
        %763 = vmatprep.subr.bf16.mxu0 0
        %764 = vmatpush1.bf16.xpose.msra.mxu0 0
        %765 = vmatprep.subr.bf16.mxu0 0
        %766 = vmatpush1.bf16.xpose.msra.mxu0 0
        %767 = vmatprep.subr.bf16.mxu0 0
        %768 = vmatpush1.bf16.xpose.msra.mxu0 0
        %769 = vmatprep.subr.bf16.mxu0 0
        %770 = vmatpush1.bf16.xpose.msra.mxu0 0
        %771 = vmatprep.subr.bf16.mxu0 0
        %772 = vmatpush1.bf16.xpose.msra.mxu0 0
        %773 = vmatprep.subr.bf16.mxu0 0
        %774 = vmatpush1.bf16.xpose.msra.mxu0 0
        %775 = vmatprep.subr.bf16.mxu0 0
        %776 = vmatpush1.bf16.xpose.msra.mxu0 0
        %777 = vmatprep.subr.bf16.mxu0 0
        %778 = vmatpush1.bf16.xpose.msra.mxu0 0
        %779 = vmatprep.subr.bf16.mxu0 0
        %780 = vmatpush1.bf16.xpose.msra.mxu0 0
        %781 = vmatprep.subr.bf16.mxu0 0
        %782 = vmatpush1.bf16.xpose.msra.mxu0 0
        %783 = vmatprep.subr.bf16.mxu0 0
        %784 = vmatpush1.bf16.xpose.msra.mxu0 0
        %785 = vmatprep.subr.bf16.mxu0 0
        %786 = vmatpush1.bf16.xpose.msra.mxu0 0
        %787 = vmatprep.subr.bf16.mxu0 0
        %788 = vmatpush1.bf16.xpose.msra.mxu0 0
        %789 = vmatprep.subr.bf16.mxu0 0
        %790 = vmatpush1.bf16.xpose.msra.mxu0 0
        %791 = vmatprep.subr.bf16.mxu0 0
        %792 = vmatpush1.bf16.xpose.msra.mxu0 0
        %793 = vmatprep.mubr.bf16.mxu0 0
        %794 = vmatmul.mubr.bf16.gmra.mrb[0].mxu0 %v756
        %v795 = vpop.f32.mrb[0].mxu0
        %v796 = vadd.f32 0.0, %v795
        %v797 = vpop.f32.mrb[0].mxu0
        %v798 = vpop.f32.mrb[0].mxu0
        %v799 = vpop.f32.mrb[0].mxu0
        %800 = vdwg.mxu0
        %v801 = vsel %vm635, %v796, -1e+10
        %v802 = vsel %vm583, %v801, -inf
        %803 = vmax.xlane.f32.xlu0 %v802
        %v804 = vpop.xlane.xlu0 %803
        %v805 = vsub.f32 %v801, %v804
        %v806 = vmul.f32 %v805, 1.442695
        %v807 = vpow.pop %v806
        %v808 = vsel %vm583, %v807, 0.0
        %809 = vadd.xlane.f32.xlu0 %v808
        %v810 = vpop.xlane.xlu0 %809
        %v811 = vrcp.pop %v810
        %v812 = vmul.f32 %v807, %v811
        %v813 = vpack.c.bf16 %v812, %v812
        %814 = vrot.lane.b32.xlu0 %v579, 56
        %v815 = vpop.permute.xlu0 %814
        %v817 = vsel %vm583, %v813, 0
        %v820 = vsel %vm654, %v815, 0
        %822 = vmatprep.subr.bf16.mxu0 0
        %823 = vmatpush1.bf16.msra.mxu0 %v820
        %824 = vmatprep.subr.bf16.mxu0 0
        %825 = vmatpush1.bf16.msra.mxu0 0
        %826 = vmatprep.subr.bf16.mxu0 0
        %827 = vmatpush1.bf16.msra.mxu0 0
        %828 = vmatprep.subr.bf16.mxu0 0
        %829 = vmatpush1.bf16.msra.mxu0 0
        %830 = vmatprep.subr.bf16.mxu0 0
        %831 = vmatpush1.bf16.msra.mxu0 0
        %832 = vmatprep.subr.bf16.mxu0 0
        %833 = vmatpush1.bf16.msra.mxu0 0
        %834 = vmatprep.subr.bf16.mxu0 0
        %835 = vmatpush1.bf16.msra.mxu0 0
        %836 = vmatprep.subr.bf16.mxu0 0
        %837 = vmatpush1.bf16.msra.mxu0 0
        %838 = vmatprep.subr.bf16.mxu0 0
        %839 = vmatpush1.bf16.msra.mxu0 0
        %840 = vmatprep.subr.bf16.mxu0 0
        %841 = vmatpush1.bf16.msra.mxu0 0
        %842 = vmatprep.subr.bf16.mxu0 0
        %843 = vmatpush1.bf16.msra.mxu0 0
        %844 = vmatprep.subr.bf16.mxu0 0
        %845 = vmatpush1.bf16.msra.mxu0 0
        %846 = vmatprep.subr.bf16.mxu0 0
        %847 = vmatpush1.bf16.msra.mxu0 0
        %848 = vmatprep.subr.bf16.mxu0 0
        %849 = vmatpush1.bf16.msra.mxu0 0
        %850 = vmatprep.subr.bf16.mxu0 0
        %851 = vmatpush1.bf16.msra.mxu0 0
        %852 = vmatprep.subr.bf16.mxu0 0
        %853 = vmatpush1.bf16.msra.mxu0 0
        %854 = vmatprep.mubr.bf16.mxu0 0
        %855 = vmatmul.mubr.bf16.gmra.mrb[0].mxu0 %v817
        %v856 = vpop.f32.mrb[0].mxu0
        %v857 = vadd.f32 0.0, %v856
        %v858 = vpop.f32.mrb[0].mxu0
        %v859 = vpop.f32.mrb[0].mxu0
        %v860 = vpop.f32.mrb[0].mxu0
        %861 = vdwg.mxu0
        %v862 = vpack.c.bf16 %v857, %v857
        %s863 = scalar_lea.vmem %s481, 4
        %v864 = vld [vmem:[%s863] sm:$0xf]
        %v866 = vsel %vm583, %v862, 0
        %v869 = vsel %vm654, %v864, 0
        %871 = vmatprep.subr.bf16.mxu0 0
        %872 = vmatpush1.bf16.msra.mxu0 %v869
        %873 = vmatprep.subr.bf16.mxu0 0
        %874 = vmatpush1.bf16.msra.mxu0 0
        %875 = vmatprep.subr.bf16.mxu0 0
        %876 = vmatpush1.bf16.msra.mxu0 0
        %877 = vmatprep.subr.bf16.mxu0 0
        %878 = vmatpush1.bf16.msra.mxu0 0
        %879 = vmatprep.subr.bf16.mxu0 0
        %880 = vmatpush1.bf16.msra.mxu0 0
        %881 = vmatprep.subr.bf16.mxu0 0
        %882 = vmatpush1.bf16.msra.mxu0 0
        %883 = vmatprep.subr.bf16.mxu0 0
        %884 = vmatpush1.bf16.msra.mxu0 0
        %885 = vmatprep.subr.bf16.mxu0 0
        %886 = vmatpush1.bf16.msra.mxu0 0
        %887 = vmatprep.subr.bf16.mxu0 0
        %888 = vmatpush1.bf16.msra.mxu0 0
        %889 = vmatprep.subr.bf16.mxu0 0
        %890 = vmatpush1.bf16.msra.mxu0 0
        %891 = vmatprep.subr.bf16.mxu0 0
        %892 = vmatpush1.bf16.msra.mxu0 0
        %893 = vmatprep.subr.bf16.mxu0 0
        %894 = vmatpush1.bf16.msra.mxu0 0
        %895 = vmatprep.subr.bf16.mxu0 0
        %896 = vmatpush1.bf16.msra.mxu0 0
        %897 = vmatprep.subr.bf16.mxu0 0
        %898 = vmatpush1.bf16.msra.mxu0 0
        %899 = vmatprep.subr.bf16.mxu0 0
        %900 = vmatpush1.bf16.msra.mxu0 0
        %901 = vmatprep.subr.bf16.mxu0 0
        %902 = vmatpush1.bf16.msra.mxu0 0
        %903 = vmatprep.mubr.bf16.mxu0 0
        %904 = vmatmul.mubr.bf16.gmra.mrb[0].mxu0 %v866
        %v905 = vpop.f32.mrb[0].mxu0
        %v906 = vadd.f32 0.0, %v905
        %v907 = vpop.f32.mrb[0].mxu0
        %v908 = vpop.f32.mrb[0].mxu0
        %v909 = vpop.f32.mrb[0].mxu0
        %910 = vdwg.mxu0
        %v911 = vadd.f32 %v750, %v906
        %912 = vrot.lane.b32.xlu0 %v579, 112
        %v913 = vpop.permute.xlu0 %912
        %914 = vrot.lane.b32.xlu0 %v579, 80
        %v915 = vpop.permute.xlu0 %914
        %v917 = vsel %vm583, %v913, 0
        %v920 = vsel %vm583, %v915, 0
        %922 = vmatprep.subr.bf16.mxu0 0
        %923 = vmatpush1.bf16.xpose.msra.mxu0 %v920
        %924 = vmatprep.subr.bf16.mxu0 0
        %925 = vmatpush1.bf16.xpose.msra.mxu0 0
        %926 = vmatprep.subr.bf16.mxu0 0
        %927 = vmatpush1.bf16.xpose.msra.mxu0 0
        %928 = vmatprep.subr.bf16.mxu0 0
        %929 = vmatpush1.bf16.xpose.msra.mxu0 0
        %930 = vmatprep.subr.bf16.mxu0 0
        %931 = vmatpush1.bf16.xpose.msra.mxu0 0
        %932 = vmatprep.subr.bf16.mxu0 0
        %933 = vmatpush1.bf16.xpose.msra.mxu0 0
        %934 = vmatprep.subr.bf16.mxu0 0
        %935 = vmatpush1.bf16.xpose.msra.mxu0 0
        %936 = vmatprep.subr.bf16.mxu0 0
        %937 = vmatpush1.bf16.xpose.msra.mxu0 0
        %938 = vmatprep.subr.bf16.mxu0 0
        %939 = vmatpush1.bf16.xpose.msra.mxu0 0
        %940 = vmatprep.subr.bf16.mxu0 0
        %941 = vmatpush1.bf16.xpose.msra.mxu0 0
        %942 = vmatprep.subr.bf16.mxu0 0
        %943 = vmatpush1.bf16.xpose.msra.mxu0 0
        %944 = vmatprep.subr.bf16.mxu0 0
        %945 = vmatpush1.bf16.xpose.msra.mxu0 0
        %946 = vmatprep.subr.bf16.mxu0 0
        %947 = vmatpush1.bf16.xpose.msra.mxu0 0
        %948 = vmatprep.subr.bf16.mxu0 0
        %949 = vmatpush1.bf16.xpose.msra.mxu0 0
        %950 = vmatprep.subr.bf16.mxu0 0
        %951 = vmatpush1.bf16.xpose.msra.mxu0 0
        %952 = vmatprep.subr.bf16.mxu0 0
        %953 = vmatpush1.bf16.xpose.msra.mxu0 0
        %954 = vmatprep.mubr.bf16.mxu0 0
        %955 = vmatmul.mubr.bf16.gmra.mrb[0].mxu0 %v917
        %v956 = vpop.f32.mrb[0].mxu0
        %v957 = vadd.f32 0.0, %v956
        %v958 = vpop.f32.mrb[0].mxu0
        %v959 = vpop.f32.mrb[0].mxu0
        %v960 = vpop.f32.mrb[0].mxu0
        %961 = vdwg.mxu0
        %v962 = vsel %vm635, %v957, -1e+10
        %v963 = vsel %vm583, %v962, -inf
        %964 = vmax.xlane.f32.xlu0 %v963
        %v965 = vpop.xlane.xlu0 %964
        %v966 = vsub.f32 %v962, %v965
        %v967 = vmul.f32 %v966, 1.442695
        %v968 = vpow.pop %v967
        %v969 = vsel %vm583, %v968, 0.0
        %970 = vadd.xlane.f32.xlu0 %v969
        %v971 = vpop.xlane.xlu0 %970
        %v972 = vrcp.pop %v971
        %v973 = vmul.f32 %v968, %v972
        %v974 = vpack.c.bf16 %v973, %v973
        %975 = vrot.lane.b32.xlu0 %v579, 48
        %v976 = vpop.permute.xlu0 %975
        %v978 = vsel %vm583, %v974, 0
        %v981 = vsel %vm654, %v976, 0
        %983 = vmatprep.subr.bf16.mxu0 0
        %984 = vmatpush1.bf16.msra.mxu0 %v981
        %985 = vmatprep.subr.bf16.mxu0 0
        %986 = vmatpush1.bf16.msra.mxu0 0
        %987 = vmatprep.subr.bf16.mxu0 0
        %988 = vmatpush1.bf16.msra.mxu0 0
        %989 = vmatprep.subr.bf16.mxu0 0
        %990 = vmatpush1.bf16.msra.mxu0 0
        %991 = vmatprep.subr.bf16.mxu0 0
        %992 = vmatpush1.bf16.msra.mxu0 0
        %993 = vmatprep.subr.bf16.mxu0 0
        %994 = vmatpush1.bf16.msra.mxu0 0
        %995 = vmatprep.subr.bf16.mxu0 0
        %996 = vmatpush1.bf16.msra.mxu0 0
        %997 = vmatprep.subr.bf16.mxu0 0
        %998 = vmatpush1.bf16.msra.mxu0 0
        %999 = vmatprep.subr.bf16.mxu0 0
        %1000 = vmatpush1.bf16.msra.mxu0 0
        %1001 = vmatprep.subr.bf16.mxu0 0
        %1002 = vmatpush1.bf16.msra.mxu0 0
        %1003 = vmatprep.subr.bf16.mxu0 0
        %1004 = vmatpush1.bf16.msra.mxu0 0
        %1005 = vmatprep.subr.bf16.mxu0 0
        %1006 = vmatpush1.bf16.msra.mxu0 0
        %1007 = vmatprep.subr.bf16.mxu0 0
        %1008 = vmatpush1.bf16.msra.mxu0 0
        %1009 = vmatprep.subr.bf16.mxu0 0
        %1010 = vmatpush1.bf16.msra.mxu0 0
        %1011 = vmatprep.subr.bf16.mxu0 0
        %1012 = vmatpush1.bf16.msra.mxu0 0
        %1013 = vmatprep.subr.bf16.mxu0 0
        %1014 = vmatpush1.bf16.msra.mxu0 0
        %1015 = vmatprep.mubr.bf16.mxu0 0
        %1016 = vmatmul.mubr.bf16.gmra.mrb[0].mxu0 %v978
        %v1017 = vpop.f32.mrb[0].mxu0
        %v1018 = vadd.f32 0.0, %v1017
        %v1019 = vpop.f32.mrb[0].mxu0
        %v1020 = vpop.f32.mrb[0].mxu0
        %v1021 = vpop.f32.mrb[0].mxu0
        %1022 = vdwg.mxu0
        %v1023 = vpack.c.bf16 %v1018, %v1018
        %s1024 = scalar_lea.vmem %s481, 8
        %v1025 = vld [vmem:[%s1024] sm:$0xf]
        %v1027 = vsel %vm583, %v1023, 0
        %v1030 = vsel %vm654, %v1025, 0
        %1032 = vmatprep.subr.bf16.mxu0 0
        %1033 = vmatpush1.bf16.msra.mxu0 %v1030
        %1034 = vmatprep.subr.bf16.mxu0 0
        %1035 = vmatpush1.bf16.msra.mxu0 0
        %1036 = vmatprep.subr.bf16.mxu0 0
        %1037 = vmatpush1.bf16.msra.mxu0 0
        %1038 = vmatprep.subr.bf16.mxu0 0
        %1039 = vmatpush1.bf16.msra.mxu0 0
        %1040 = vmatprep.subr.bf16.mxu0 0
        %1041 = vmatpush1.bf16.msra.mxu0 0
        %1042 = vmatprep.subr.bf16.mxu0 0
        %1043 = vmatpush1.bf16.msra.mxu0 0
        %1044 = vmatprep.subr.bf16.mxu0 0
        %1045 = vmatpush1.bf16.msra.mxu0 0
        %1046 = vmatprep.subr.bf16.mxu0 0
        %1047 = vmatpush1.bf16.msra.mxu0 0
        %1048 = vmatprep.subr.bf16.mxu0 0
        %1049 = vmatpush1.bf16.msra.mxu0 0
        %1050 = vmatprep.subr.bf16.mxu0 0
        %1051 = vmatpush1.bf16.msra.mxu0 0
        %1052 = vmatprep.subr.bf16.mxu0 0
        %1053 = vmatpush1.bf16.msra.mxu0 0
        %1054 = vmatprep.subr.bf16.mxu0 0
        %1055 = vmatpush1.bf16.msra.mxu0 0
        %1056 = vmatprep.subr.bf16.mxu0 0
        %1057 = vmatpush1.bf16.msra.mxu0 0
        %1058 = vmatprep.subr.bf16.mxu0 0
        %1059 = vmatpush1.bf16.msra.mxu0 0
        %1060 = vmatprep.subr.bf16.mxu0 0
        %1061 = vmatpush1.bf16.msra.mxu0 0
        %1062 = vmatprep.subr.bf16.mxu0 0
        %1063 = vmatpush1.bf16.msra.mxu0 0
        %1064 = vmatprep.mubr.bf16.mxu0 0
        %1065 = vmatmul.mubr.bf16.gmra.mrb[0].mxu0 %v1027
        %v1066 = vpop.f32.mrb[0].mxu0
        %v1067 = vadd.f32 0.0, %v1066
        %v1068 = vpop.f32.mrb[0].mxu0
        %v1069 = vpop.f32.mrb[0].mxu0
        %v1070 = vpop.f32.mrb[0].mxu0
        %1071 = vdwg.mxu0
        %v1072 = vadd.f32 %v911, %v1067
        %1073 = vrot.lane.b32.xlu0 %v579, 104
        %v1074 = vpop.permute.xlu0 %1073
        %1075 = vrot.lane.b32.xlu0 %v579, 72
        %v1076 = vpop.permute.xlu0 %1075
        %v1078 = vsel %vm583, %v1074, 0
        %v1081 = vsel %vm583, %v1076, 0
        %1083 = vmatprep.subr.bf16.mxu0 0
        %1084 = vmatpush1.bf16.xpose.msra.mxu0 %v1081
        %1085 = vmatprep.subr.bf16.mxu0 0
        %1086 = vmatpush1.bf16.xpose.msra.mxu0 0
        %1087 = vmatprep.subr.bf16.mxu0 0
        %1088 = vmatpush1.bf16.xpose.msra.mxu0 0
        %1089 = vmatprep.subr.bf16.mxu0 0
        %1090 = vmatpush1.bf16.xpose.msra.mxu0 0
        %1091 = vmatprep.subr.bf16.mxu0 0
        %1092 = vmatpush1.bf16.xpose.msra.mxu0 0
        %1093 = vmatprep.subr.bf16.mxu0 0
        %1094 = vmatpush1.bf16.xpose.msra.mxu0 0
        %1095 = vmatprep.subr.bf16.mxu0 0
        %1096 = vmatpush1.bf16.xpose.msra.mxu0 0
        %1097 = vmatprep.subr.bf16.mxu0 0
        %1098 = vmatpush1.bf16.xpose.msra.mxu0 0
        %1099 = vmatprep.subr.bf16.mxu0 0
        %1100 = vmatpush1.bf16.xpose.msra.mxu0 0
        %1101 = vmatprep.subr.bf16.mxu0 0
        %1102 = vmatpush1.bf16.xpose.msra.mxu0 0
        %1103 = vmatprep.subr.bf16.mxu0 0
        %1104 = vmatpush1.bf16.xpose.msra.mxu0 0
        %1105 = vmatprep.subr.bf16.mxu0 0
        %1106 = vmatpush1.bf16.xpose.msra.mxu0 0
        %1107 = vmatprep.subr.bf16.mxu0 0
        %1108 = vmatpush1.bf16.xpose.msra.mxu0 0
        %1109 = vmatprep.subr.bf16.mxu0 0
        %1110 = vmatpush1.bf16.xpose.msra.mxu0 0
        %1111 = vmatprep.subr.bf16.mxu0 0
        %1112 = vmatpush1.bf16.xpose.msra.mxu0 0
        %1113 = vmatprep.subr.bf16.mxu0 0
        %1114 = vmatpush1.bf16.xpose.msra.mxu0 0
        %1115 = vmatprep.mubr.bf16.mxu0 0
        %1116 = vmatmul.mubr.bf16.gmra.mrb[0].mxu0 %v1078
        %v1117 = vpop.f32.mrb[0].mxu0
        %v1118 = vadd.f32 0.0, %v1117
        %v1119 = vpop.f32.mrb[0].mxu0
        %v1120 = vpop.f32.mrb[0].mxu0
        %v1121 = vpop.f32.mrb[0].mxu0
        %1122 = vdwg.mxu0
        %v1123 = vsel %vm635, %v1118, -1e+10
        %v1124 = vsel %vm583, %v1123, -inf
        %1125 = vmax.xlane.f32.xlu0 %v1124
        %v1126 = vpop.xlane.xlu0 %1125
        %v1127 = vsub.f32 %v1123, %v1126
        %v1128 = vmul.f32 %v1127, 1.442695
        %v1129 = vpow.pop %v1128
        %v1130 = vsel %vm583, %v1129, 0.0
        %1131 = vadd.xlane.f32.xlu0 %v1130
        %v1132 = vpop.xlane.xlu0 %1131
        %v1133 = vrcp.pop %v1132
        %v1134 = vmul.f32 %v1129, %v1133
        %v1135 = vpack.c.bf16 %v1134, %v1134
        %1136 = vrot.lane.b32.xlu0 %v579, 40
        %v1137 = vpop.permute.xlu0 %1136
        %v1139 = vsel %vm583, %v1135, 0
        %v1142 = vsel %vm654, %v1137, 0
        %1144 = vmatprep.subr.bf16.mxu0 0
        %1145 = vmatpush1.bf16.msra.mxu0 %v1142
        %1146 = vmatprep.subr.bf16.mxu0 0
        %1147 = vmatpush1.bf16.msra.mxu0 0
        %1148 = vmatprep.subr.bf16.mxu0 0
        %1149 = vmatpush1.bf16.msra.mxu0 0
        %1150 = vmatprep.subr.bf16.mxu0 0
        %1151 = vmatpush1.bf16.msra.mxu0 0
        %1152 = vmatprep.subr.bf16.mxu0 0
        %1153 = vmatpush1.bf16.msra.mxu0 0
        %1154 = vmatprep.subr.bf16.mxu0 0
        %1155 = vmatpush1.bf16.msra.mxu0 0
        %1156 = vmatprep.subr.bf16.mxu0 0
        %1157 = vmatpush1.bf16.msra.mxu0 0
        %1158 = vmatprep.subr.bf16.mxu0 0
        %1159 = vmatpush1.bf16.msra.mxu0 0
        %1160 = vmatprep.subr.bf16.mxu0 0
        %1161 = vmatpush1.bf16.msra.mxu0 0
        %1162 = vmatprep.subr.bf16.mxu0 0
        %1163 = vmatpush1.bf16.msra.mxu0 0
        %1164 = vmatprep.subr.bf16.mxu0 0
        %1165 = vmatpush1.bf16.msra.mxu0 0
        %1166 = vmatprep.subr.bf16.mxu0 0
        %1167 = vmatpush1.bf16.msra.mxu0 0
        %1168 = vmatprep.subr.bf16.mxu0 0
        %1169 = vmatpush1.bf16.msra.mxu0 0
        %1170 = vmatprep.subr.bf16.mxu0 0
        %1171 = vmatpush1.bf16.msra.mxu0 0
        %1172 = vmatprep.subr.bf16.mxu0 0
        %1173 = vmatpush1.bf16.msra.mxu0 0
        %1174 = vmatprep.subr.bf16.mxu0 0
        %1175 = vmatpush1.bf16.msra.mxu0 0
        %1176 = vmatprep.mubr.bf16.mxu0 0
        %1177 = vmatmul.mubr.bf16.gmra.mrb[0].mxu0 %v1139
        %v1178 = vpop.f32.mrb[0].mxu0
        %v1179 = vadd.f32 0.0, %v1178
        %v1180 = vpop.f32.mrb[0].mxu0
        %v1181 = vpop.f32.mrb[0].mxu0
        %v1182 = vpop.f32.mrb[0].mxu0
        %1183 = vdwg.mxu0
        %v1184 = vpack.c.bf16 %v1179, %v1179
        %s1185 = scalar_lea.vmem %s481, 12
        %v1186 = vld [vmem:[%s1185] sm:$0xf]
        %v1188 = vsel %vm583, %v1184, 0
        %v1191 = vsel %vm654, %v1186, 0
        %1193 = vmatprep.subr.bf16.mxu0 0
        %1194 = vmatpush1.bf16.msra.mxu0 %v1191
        %1195 = vmatprep.subr.bf16.mxu0 0
        %1196 = vmatpush1.bf16.msra.mxu0 0
        %1197 = vmatprep.subr.bf16.mxu0 0
        %1198 = vmatpush1.bf16.msra.mxu0 0
        %1199 = vmatprep.subr.bf16.mxu0 0
        %1200 = vmatpush1.bf16.msra.mxu0 0
        %1201 = vmatprep.subr.bf16.mxu0 0
        %1202 = vmatpush1.bf16.msra.mxu0 0
        %1203 = vmatprep.subr.bf16.mxu0 0
        %1204 = vmatpush1.bf16.msra.mxu0 0
        %1205 = vmatprep.subr.bf16.mxu0 0
        %1206 = vmatpush1.bf16.msra.mxu0 0
        %1207 = vmatprep.subr.bf16.mxu0 0
        %1208 = vmatpush1.bf16.msra.mxu0 0
        %1209 = vmatprep.subr.bf16.mxu0 0
        %1210 = vmatpush1.bf16.msra.mxu0 0
        %1211 = vmatprep.subr.bf16.mxu0 0
        %1212 = vmatpush1.bf16.msra.mxu0 0
        %1213 = vmatprep.subr.bf16.mxu0 0
        %1214 = vmatpush1.bf16.msra.mxu0 0
        %1215 = vmatprep.subr.bf16.mxu0 0
        %1216 = vmatpush1.bf16.msra.mxu0 0
        %1217 = vmatprep.subr.bf16.mxu0 0
        %1218 = vmatpush1.bf16.msra.mxu0 0
        %1219 = vmatprep.subr.bf16.mxu0 0
        %1220 = vmatpush1.bf16.msra.mxu0 0
        %1221 = vmatprep.subr.bf16.mxu0 0
        %1222 = vmatpush1.bf16.msra.mxu0 0
        %1223 = vmatprep.subr.bf16.mxu0 0
        %1224 = vmatpush1.bf16.msra.mxu0 0
        %1225 = vmatprep.mubr.bf16.mxu0 0
        %1226 = vmatmul.mubr.bf16.gmra.mrb[0].mxu0 %v1188
        %v1227 = vpop.f32.mrb[0].mxu0
        %v1228 = vadd.f32 0.0, %v1227
        %v1229 = vpop.f32.mrb[0].mxu0
        %v1230 = vpop.f32.mrb[0].mxu0
        %v1231 = vpop.f32.mrb[0].mxu0
        %1232 = vdwg.mxu0
        %v1233 = vadd.f32 %v1072, %v1228
        %v1234 = vadd.f32 %v507, %v1233
        %v1235 = vsel %vm535, %v1234, 0.0
        %1236 = vadd.xlane.f32.xlu0 %v1235
        %v1237 = vpop.xlane.xlu0 %1236
        %v1238 = vrcp.pop 32.0
        %v1239 = vmul.f32 %v1237, %v1238
        %v1240 = vsub.f32 %v1234, %v1239
        %v1241 = vmul.f32 %v1240, %v1240
        %v1242 = vsel %vm535, %v1241, 0.0
        %1243 = vadd.xlane.f32.xlu0 %v1242
        %v1244 = vpop.xlane.xlu0 %1243
        %v1245 = vmul.f32 %v1244, %v1238
        %v1246 = vadd.f32 %v1245, 1e-05
        %v1247 = vrsqrt.pop %v1246
        %v1248 = vmul.f32 %v1240, %v1247
        %v1249 = vlaneseq
        %v1250 = vshrl.u32 %v1249, 7
        %v1251 = vsub.s32 1, %v1250
        %v1252 = vrot.slane %v509, %v1251
        %v1253 = vmul.f32 %v1248, %v1252
        %v1254 = vlaneseq
        %v1255 = vshrl.u32 %v1254, 7
        %v1256 = vsub.s32 2, %v1255
        %v1257 = vrot.slane %v509, %v1256
        %v1258 = vadd.f32 %v1253, %v1257
        %v1259 = vpack.c.bf16 %v1258, %v1258
        %v1260 = vld [vmem:[%s490] sm:$0xf]
        %v1261 = vld [vmem:[%s490 + $0x4] sm:$0xf]
        %v1262 = vld [vmem:[%s490 + $0x8] sm:$0xf]
        %v1263 = vld [vmem:[%s490 + $0xc] sm:$0xf]
        %v1264 = vld [vmem:[%s493] sm:$0x1]
        %v1266 = vlaneseq
        %v1267 = vshrl.u32 %v1266, 7
        %v1268 = vsub.s32 0, %v1267
        %v1269 = vrot.slane %v1264, %v1268
        %v1275 = vunpack.c.l.b16 %v1260
        %v1276 = vunpack.c.l.b16 %v1261
        %v1277 = vunpack.c.l.b16 %v1262
        %v1278 = vunpack.c.l.b16 %v1263
        %v1279 = vpack.c.b16 %v1276, %v1275
        %v1280 = vpack.c.b16 %v1278, %v1277
        %v1284 = vsel %vm535, %v1259, 0
        %1286 = vmatprep.subr.bf16.mxu0 0
        %1287 = vmatpush1.bf16.msra.mxu0 %v1279
        %1288 = vmatprep.subr.bf16.mxu0 0
        %1289 = vmatpush1.bf16.msra.mxu0 %v1280
        %1290 = vmatprep.subr.bf16.mxu0 0
        %1291 = vmatpush1.bf16.msra.mxu0 0
        %1292 = vmatprep.subr.bf16.mxu0 0
        %1293 = vmatpush1.bf16.msra.mxu0 0
        %1294 = vmatprep.subr.bf16.mxu0 0
        %1295 = vmatpush1.bf16.msra.mxu0 0
        %1296 = vmatprep.subr.bf16.mxu0 0
        %1297 = vmatpush1.bf16.msra.mxu0 0
        %1298 = vmatprep.subr.bf16.mxu0 0
        %1299 = vmatpush1.bf16.msra.mxu0 0
        %1300 = vmatprep.subr.bf16.mxu0 0
        %1301 = vmatpush1.bf16.msra.mxu0 0
        %1302 = vmatprep.subr.bf16.mxu0 0
        %1303 = vmatpush1.bf16.msra.mxu0 0
        %1304 = vmatprep.subr.bf16.mxu0 0
        %1305 = vmatpush1.bf16.msra.mxu0 0
        %1306 = vmatprep.subr.bf16.mxu0 0
        %1307 = vmatpush1.bf16.msra.mxu0 0
        %1308 = vmatprep.subr.bf16.mxu0 0
        %1309 = vmatpush1.bf16.msra.mxu0 0
        %1310 = vmatprep.subr.bf16.mxu0 0
        %1311 = vmatpush1.bf16.msra.mxu0 0
        %1312 = vmatprep.subr.bf16.mxu0 0
        %1313 = vmatpush1.bf16.msra.mxu0 0
        %1314 = vmatprep.subr.bf16.mxu0 0
        %1315 = vmatpush1.bf16.msra.mxu0 0
        %1316 = vmatprep.subr.bf16.mxu0 0
        %1317 = vmatpush1.bf16.msra.mxu0 0
        %1318 = vmatprep.mubr.bf16.mxu0 0
        %1319 = vmatmul.mubr.bf16.gmra.mrb[0].mxu0 %v1284
        %v1320 = vpop.f32.mrb[0].mxu0
        %v1321 = vadd.f32 %v1269, %v1320
        %v1322 = vpop.f32.mrb[0].mxu0
        %v1323 = vpop.f32.mrb[0].mxu0
        %v1324 = vpop.f32.mrb[0].mxu0
        %1325 = vdwg.mxu0
        %v1326 = vmax.f32 %v1321, 0.0
        %v1327 = vpack.c.bf16 %v1326, %v1326
        %v1328 = vld [vmem:[%s498] sm:$0xf]
        %v1329 = vld [vmem:[%s498 + $0x4] sm:$0xf]
        %v1330 = vld [vmem:[%s498 + $0x8] sm:$0xf]
        %v1331 = vld [vmem:[%s498 + $0xc] sm:$0xf]
        %v1332 = vld [vmem:[%s498 + $0x10] sm:$0xf]
        %v1333 = vld [vmem:[%s498 + $0x14] sm:$0xf]
        %v1334 = vld [vmem:[%s498 + $0x18] sm:$0xf]
        %v1335 = vld [vmem:[%s498 + $0x1c] sm:$0xf]
        %v1336 = vlaneseq
        %v1337 = vshrl.u32 %v1336, 7
        %v1338 = vsub.s32 3, %v1337
        %v1339 = vrot.slane %v509, %v1338
        %v1348 = vunpack.c.l.b16 %v1328
        %v1349 = vunpack.c.l.b16 %v1329
        %v1350 = vunpack.c.l.b16 %v1330
        %v1351 = vunpack.c.l.b16 %v1331
        %v1352 = vunpack.c.l.b16 %v1332
        %v1353 = vunpack.c.l.b16 %v1333
        %v1354 = vunpack.c.l.b16 %v1334
        %v1355 = vunpack.c.l.b16 %v1335
        %v1356 = vpack.c.b16 %v1349, %v1348
        %v1357 = vpack.c.b16 %v1351, %v1350
        %v1358 = vpack.c.b16 %v1353, %v1352
        %v1359 = vpack.c.b16 %v1355, %v1354
        %vm1364 = vcmask 523264
        %v1366 = vsel %vm1364, %v1327, 0
        %1368 = vmatprep.subr.bf16.mxu0 0
        %1369 = vmatpush1.bf16.msra.mxu0 %v1356
        %1370 = vmatprep.subr.bf16.mxu0 0
        %1371 = vmatpush1.bf16.msra.mxu0 %v1357
        %1372 = vmatprep.subr.bf16.mxu0 0
        %1373 = vmatpush1.bf16.msra.mxu0 %v1358
        %1374 = vmatprep.subr.bf16.mxu0 0
        %1375 = vmatpush1.bf16.msra.mxu0 %v1359
        %1376 = vmatprep.subr.bf16.mxu0 0
        %1377 = vmatpush1.bf16.msra.mxu0 0
        %1378 = vmatprep.subr.bf16.mxu0 0
        %1379 = vmatpush1.bf16.msra.mxu0 0
        %1380 = vmatprep.subr.bf16.mxu0 0
        %1381 = vmatpush1.bf16.msra.mxu0 0
        %1382 = vmatprep.subr.bf16.mxu0 0
        %1383 = vmatpush1.bf16.msra.mxu0 0
        %1384 = vmatprep.subr.bf16.mxu0 0
        %1385 = vmatpush1.bf16.msra.mxu0 0
        %1386 = vmatprep.subr.bf16.mxu0 0
        %1387 = vmatpush1.bf16.msra.mxu0 0
        %1388 = vmatprep.subr.bf16.mxu0 0
        %1389 = vmatpush1.bf16.msra.mxu0 0
        %1390 = vmatprep.subr.bf16.mxu0 0
        %1391 = vmatpush1.bf16.msra.mxu0 0
        %1392 = vmatprep.subr.bf16.mxu0 0
        %1393 = vmatpush1.bf16.msra.mxu0 0
        %1394 = vmatprep.subr.bf16.mxu0 0
        %1395 = vmatpush1.bf16.msra.mxu0 0
        %1396 = vmatprep.subr.bf16.mxu0 0
        %1397 = vmatpush1.bf16.msra.mxu0 0
        %1398 = vmatprep.subr.bf16.mxu0 0
        %1399 = vmatpush1.bf16.msra.mxu0 0
        %1400 = vmatprep.mubr.bf16.mxu0 0
        %1401 = vmatmul.mubr.bf16.gmra.mrb[0].mxu0 %v1366
        %v1402 = vpop.f32.mrb[0].mxu0
        %v1403 = vadd.f32 %v1339, %v1402
        %v1404 = vpop.f32.mrb[0].mxu0
        %v1405 = vpop.f32.mrb[0].mxu0
        %v1406 = vpop.f32.mrb[0].mxu0
        %1407 = vdwg.mxu0
        %v1408 = vadd.f32 %v1258, %v1403
        %v1409 = vsel %vm535, %v1408, 0.0
        %1410 = vadd.xlane.f32.xlu0 %v1409
        %v1411 = vpop.xlane.xlu0 %1410
        %v1412 = vmul.f32 %v1411, %v1238
        %v1413 = vsub.f32 %v1408, %v1412
        %v1414 = vmul.f32 %v1413, %v1413
        %v1415 = vsel %vm535, %v1414, 0.0
        %1416 = vadd.xlane.f32.xlu0 %v1415
        %v1417 = vpop.xlane.xlu0 %1416
        %v1418 = vmul.f32 %v1417, %v1238
        %v1419 = vadd.f32 %v1418, 1e-05
        %v1420 = vrsqrt.pop %v1419
        %v1421 = vmul.f32 %v1413, %v1420
        %v1422 = vlaneseq
        %v1423 = vshrl.u32 %v1422, 7
        %v1424 = vsub.s32 4, %v1423
        %v1425 = vrot.slane %v509, %v1424
        %v1426 = vmul.f32 %v1421, %v1425
        %v1427 = vlaneseq
        %v1428 = vshrl.u32 %v1427, 7
        %v1429 = vsub.s32 5, %v1428
        %v1430 = vrot.slane %v509, %v1429
        %v1431 = vadd.f32 %v1426, %v1430
        %1432 = vst.msk [vmem:[%s465] sm:$0xff] %vm535, %v1431
        %s1433 = sand.u32 %s280, 1
        %s1434 = scalar_lea.sflag [#allocation4], %s1433
        %s1435 = sand.u32 %s280, 1
        %s1436 = smul.addr %s1435, 8
        %s1437 = scalar_lea.vmem [#allocation5], %s1436
        // Predicated region
        $region65: #{tpu_custom_call.1} parent=55 // pred_check
          %p1438 = pneg %p290
        $region66: #{tpu_custom_call.1} parent=55 // pred_check_branch
          %1440 = sbr.rel (%p1438) target = $region68
        $region67: #{tpu_custom_call.1} parent=55 // pred_region
          %s1442 = ssub.s32 128, 128
          %1443 = vsyncadd %s1434, %s1442
          %s1444 = smul.addr %s30, 128
          %s1445 = scalar_lea.hbm %s9, %s1444
          %s1447 = sshll.u32 %s1437, 4
          %s1448 = int_to_ptr.vmem [resolvable:$true] %s1447
          %1450 = dma.vmem_to_hbm [thread:$0]  %s1448, 128, %s1445, %s1434
        $region68: #{tpu_custom_call.1} parent=55 // pred_fallthru
          _
      $region56: #{tpu_custom_call.1} parent=5 // pred_fallthru
        _
      %p1451 = scmp.le.s32.totalorder 2, %s21
      // Predicated region
      $region69: #{tpu_custom_call.1} parent=5 // pred_check
        %p1452 = pneg %p1451
      $region70: #{tpu_custom_call.1} parent=5 // pred_check_branch
        %1454 = sbr.rel (%p1452) target = $region72
      $region71: #{tpu_custom_call.1} parent=5 // pred_region
        %s1455 = ssub.s32 %s21, 2
        // Predicated region
        $region73: #{tpu_custom_call.1} parent=71 // pred_check
          %p1456 = pneg %p296
        $region74: #{tpu_custom_call.1} parent=71 // pred_check_branch
          %1458 = sbr.rel (%p1456) target = $region76
        $region75: #{tpu_custom_call.1} parent=71 // pred_region
          %s1459 = sand.u32 %s281, 1
          %s1460 = scalar_lea.sflag [#allocation4], %s1459
          %s1461 = sand.u32 %s281, 1
          %s1462 = smul.addr %s1461, 8
          %s1463 = scalar_lea.vmem [#allocation5], %s1462
          %1464 = dma.done %s1460, 128
        $region76: #{tpu_custom_call.1} parent=71 // pred_fallthru
          _
      $region72: #{tpu_custom_call.1} parent=5 // pred_fallthru
        _
    $region6: #{tpu_custom_call.1} parent=1 // loop_footer
      %s25 = sadd.s32 1, %s21
    $region7: #{tpu_custom_call.1} parent=1 // loop_footer_branch
      %20 = sbr.rel target = $region3
    $region8: #{tpu_custom_call.1} parent=1 // loop_exit
      _
    %1465 = vsyncpa [#allocation3], 1
    %s1466 = scalar_lea.sflag [#allocation3], 1
    %1467 = vsyncpa %s1466, 1
    %1468 = vsyncpa [#allocation4], 1
    %s1469 = scalar_lea.sflag [#allocation4], 1
    %1470 = vsyncpa %s1469, 1

</llo_original>
